<compile_context>
chip_gen: v7x
topology: tpu7x:2x2x1
jax: 0.10.0
libtpu: 0.0.40
codegen_flags: <defaults>
</compile_context>

<pallas_src>
import jax
import jax.numpy as jnp
from jax import lax
from jax.experimental import pallas as pl
from jax.experimental.pallas import tpu as pltpu

# ----------------------------- problem sizes --------------------------------
N, H, W = 2, 16, 16          # batch, spatial
C_IN = 4                     # in_planes
C_OUT = 8                    # output_channels
EPS = 1e-5                   # BatchNorm2d default eps

NH = N * H                   # 32  rows of the activation slab
WC = W * C_OUT               # 128 lanes (lane-dense last dim)
M_TOTAL = N * H * W          # 512 BN reduction size


# ------------------------------- kernel -------------------------------------
def upconvblock_kernel(x_ref, v_ref, w_hbm, out_ref, w_vmem, w_sem):
    # Kick off all three per-conv weight copies up front; each conv waits only
    # on its own slice right before its first matmul (DMA hidden behind the
    # preceding conv + BN compute).
    for c in range(3):
        pltpu.make_async_copy(w_hbm.at[c], w_vmem.at[c], w_sem.at[c]).start()

    x = x_ref[...]                                            # (NH, WC) f32

    # Batch-boundary masks for the +-1 H halo (column vectors, lane-broadcast).
    row_h = lax.broadcasted_iota(jnp.int32, (NH, 1), 0) % H
    mask_up = (row_h > 0).astype(jnp.float32)                 # zero where h == 0
    mask_dn = (row_h < H - 1).astype(jnp.float32)             # zero where h == H-1

    def conv3x3(y, c):
        """3x3 'same' conv on the (NH, WC) slab.

        H halo via sublane roll + batch-boundary mask; W halo (incl. zero
        padding at w=0/W-1) is folded into the three (WC, WC) tap blocks of
        the pre-packed weight, so the conv is three K=WC bf16 MXU pushes
        accumulated in f32.
        """
        pltpu.make_async_copy(w_hbm.at[c], w_vmem.at[c], w_sem.at[c]).wait()
        y_up = pltpu.roll(y, 1, axis=0) * mask_up             # y[r-1], 0 at h==0
        y_dn = pltpu.roll(y, NH - 1, axis=0) * mask_dn        # y[r+1], 0 at h==H-1
        acc = jnp.dot(y.astype(jnp.bfloat16), w_vmem[c, 1],
                      preferred_element_type=jnp.float32)     # center tap first
        acc = acc + jnp.dot(y_up.astype(jnp.bfloat16), w_vmem[c, 0],
                            preferred_element_type=jnp.float32)
        acc = acc + jnp.dot(y_dn.astype(jnp.bfloat16), w_vmem[c, 2],
                            preferred_element_type=jnp.float32)
        return acc

    def chan_group_sum(row):
        """(1, WC) -> (1, WC): per-channel sum over the W groups, lane-broadcast.

        Lane layout is w*C_OUT + o; rolling by C_OUT*2^k keeps the channel
        residue class, so 4 roll-and-add steps give the full 16-way sum in
        every lane (XLU slot, no MXU).
        """
        for k in range(4):                                    # shifts 8,16,32,64
            row = row + pltpu.roll(row, C_OUT << k, axis=1)
        return row

    def bn_relu(y, gamma_l, beta_l):
        """Train-mode BatchNorm (batch stats over N*H*W) + ReLU, per channel."""
        s1 = chan_group_sum(jnp.sum(y, axis=0, keepdims=True))
        s2 = chan_group_sum(jnp.sum(y * y, axis=0, keepdims=True))
        mean = s1 * (1.0 / M_TOTAL)                           # (1, WC), row-broadcast
        var = s2 * (1.0 / M_TOTAL) - mean * mean
        inv = lax.rsqrt(var + EPS)
        return jnp.maximum((y - mean) * (inv * gamma_l) + beta_l, 0.0)

    # scaleup: conv + bias (no BN)
    y0 = conv3x3(x, 0) + v_ref[0:1, :]
    # conv1 -> bn1 -> relu   (conv bias dropped: cancels under batch-mean)
    y1 = bn_relu(conv3x3(y0, 1), v_ref[1:2, :], v_ref[2:3, :])
    # conv2 -> bn2 -> relu
    y2 = bn_relu(conv3x3(y1, 2), v_ref[3:4, :], v_ref[4:5, :])

    out_ref[...] = y2                                         # full (32,128) vst


# --------------------- parameter packing (init-time, once) ------------------
def _fold_conv_weight(w_hwio):
    """(3, 3, ci, co) HWIO -> (3, W*ci, W*co) per-H-tap folded conv weight.

    Tap block kh multiplies the H-shifted slab (rows h-1 / h / h+1); within a
    block the +-1 W taps sit on a block tri-diagonal so the W halo (and its
    zero padding at w=0 / w=W-1) is handled by the matmul itself.
    """
    ci, co = w_hwio.shape[2], w_hwio.shape[3]
    wp = jnp.arange(W)[None, :, None]                # source column w'
    wq = jnp.arange(W)[None, None, :]                # dest column w
    dw = jnp.arange(3)[:, None, None]
    ind = (wp == wq + dw - 1).astype(jnp.float32)    # (3, W, W)
    big = jnp.einsum("dpw,hdio->hpiwo", ind, w_hwio.astype(jnp.float32))
    return big.reshape(3, W * ci, W * co)


def pack_params(params):
    """Fold & pack all module parameters ONCE (hoisted out of the forward path)."""
    # Pad scaleup input channels so all three folded weights share (3, WC, WC).
    w0p = jnp.pad(params["w0"], ((0, 0), (0, 0), (0, C_OUT - C_IN), (0, 0)))
    big_w = jnp.stack([_fold_conv_weight(w0p),
                       _fold_conv_weight(params["w1"]),
                       _fold_conv_weight(params["w2"])])      # (3, 3, WC, WC)
    big_w = big_w.astype(jnp.bfloat16)                        # halve the HBM transfer
    # Per-channel vectors broadcast across W (lane layout w*C + o).
    # b1/b2 intentionally omitted: exact cancellation under train-mode BN.
    vecs = jnp.concatenate(
        [jnp.tile(params[k], (1, W)) for k in ("b0", "g1", "be1", "g2", "be2")],
        axis=0).astype(jnp.float32)                           # (5, WC)
    return big_w, vecs


# ------------------------------ forward wrapper ------------------------------
@jax.jit
def upconvblock_forward(x_nchw, big_w, vecs):
    """x_nchw: (N, C_IN, H, W) f32; big_w/vecs from pack_params.  -> (N,C_OUT,H,W)."""
    # Lane-dense activation slab: NHWC, channel-pad to C_OUT, (N*H, W*C_OUT).
    x = jnp.transpose(x_nchw, (0, 2, 3, 1)).astype(jnp.float32)
    x = jnp.pad(x, ((0, 0), (0, 0), (0, 0), (0, C_OUT - C_IN)))
    x_slab = x.reshape(NH, WC)

    vmem = pl.BlockSpec(memory_space=pltpu.MemorySpace.VMEM)
    out_slab = pl.pallas_call(
        upconvblock_kernel,
        out_shape=jax.ShapeDtypeStruct((NH, WC), jnp.float32),
        in_specs=[vmem, vmem, pl.BlockSpec(memory_space=pl.ANY)],
        out_specs=vmem,
        scratch_shapes=[pltpu.VMEM((3, 3, WC, WC), jnp.bfloat16),
                        pltpu.SemaphoreType.DMA((3,))],
    )(x_slab, vecs, big_w)

    return jnp.transpose(out_slab.reshape(N, H, W, C_OUT), (0, 3, 1, 2))


# ------------------------- pure-JAX reference (for checking) ----------------
def _ref_conv3x3(x, w, b):
    y = lax.conv_general_dilated(
        x, w, window_strides=(1, 1), padding="SAME",
        dimension_numbers=("NHWC", "HWIO", "NHWC"))
    return y + b.reshape(1, 1, 1, -1)


def _ref_bn_relu(y, gamma, beta):
    mean = jnp.mean(y, axis=(0, 1, 2), keepdims=True)
    var = jnp.mean((y - mean) ** 2, axis=(0, 1, 2), keepdims=True)
    y_hat = (y - mean) * lax.rsqrt(var + EPS)
    return jnp.maximum(y_hat * gamma.reshape(1, 1, 1, -1)
                       + beta.reshape(1, 1, 1, -1), 0.0)


def upconvblock_ref(x_nchw, p):
    x = jnp.transpose(x_nchw, (0, 2, 3, 1))
    y = _ref_conv3x3(x, p["w0"], p["b0"][0])
    # reference keeps b1/b2 (faithful to the PyTorch module with bias=True);
    # they cancel under train-mode BN, so the bias-free kernel must still match.
    y = _ref_bn_relu(_ref_conv3x3(y, p["w1"], p["b1"][0]), p["g1"][0], p["be1"][0])
    y = _ref_bn_relu(_ref_conv3x3(y, p["w2"], p["b2"][0]), p["g2"][0], p["be2"][0])
    return jnp.transpose(y, (0, 3, 1, 2))


if __name__ == "__main__":
    key = jax.random.PRNGKey(0)
    keys = jax.random.split(key, 11)

    # PyTorch-style NCHW input.
    x = jax.random.normal(keys[0], (N, C_IN, H, W), jnp.float32)

    # Synthetic parameters; conv weights kept in HWIO (PyTorch OIHW would be
    # w.transpose(2, 3, 1, 0)), BN/bias params as (1, C).
    params = {
        "w0": 0.2 * jax.random.normal(keys[1], (3, 3, C_IN, C_OUT), jnp.float32),
        "b0": 0.1 * jax.random.normal(keys[2], (1, C_OUT), jnp.float32),
        "w1": 0.2 * jax.random.normal(keys[3], (3, 3, C_OUT, C_OUT), jnp.float32),
        "b1": 0.1 * jax.random.normal(keys[4], (1, C_OUT), jnp.float32),
        "g1": 1.0 + 0.1 * jax.random.normal(keys[5], (1, C_OUT), jnp.float32),
        "be1": 0.1 * jax.random.normal(keys[6], (1, C_OUT), jnp.float32),
        "w2": 0.2 * jax.random.normal(keys[7], (3, 3, C_OUT, C_OUT), jnp.float32),
        "b2": 0.1 * jax.random.normal(keys[8], (1, C_OUT), jnp.float32),
        "g2": 1.0 + 0.1 * jax.random.normal(keys[9], (1, C_OUT), jnp.float32),
        "be2": 0.05 + 0.1 * jax.random.normal(keys[10], (1, C_OUT), jnp.float32),
    }

    # Pack / fold weights ONCE at init time (per perf review) — not per forward.
    big_w, vecs = pack_params(params)
    big_w = jax.block_until_ready(big_w)

    out = jax.block_until_ready(upconvblock_forward(x, big_w, vecs))
    ref = jax.block_until_ready(upconvblock_ref(x, params))

    assert out.shape == (N, C_OUT, H, W), out.shape
    # Tolerance widened vs the all-f32 v1 (1e-3): weights + matmul operands are
    # bf16-rounded (per perf review), accumulation stays f32; structural bugs
    # would still produce O(1) errors.
    max_err = float(jnp.max(jnp.abs(out - ref)))
    assert jnp.allclose(out, ref, atol=3e-2, rtol=3e-2), max_err

    print("KERNEL_OK")
</pallas_src>

<mosaic_0001>
module attributes {stable_mosaic.version = 11 : i64} {
  func.func @upconvblock_kernel(%arg0: memref<32x128xf32, #tpu.memory_space<vmem>>, %arg1: memref<5x128xf32, #tpu.memory_space<vmem>>, %arg2: memref<3x3x128x128xbf16, #tpu.memory_space<any>>, %arg3: memref<32x128xf32, #tpu.memory_space<vmem>>, %arg4: memref<3x3x128x128xbf16, #tpu.memory_space<vmem>>, %arg5: memref<3x!tpu.dma_semaphore, #tpu.memory_space<semaphore_mem>>) attributes {dimension_semantics = [], scalar_prefetch = 0 : i64, scratch_operands = 2 : i64, tpu.core_type = #tpu.core_type<tc>} {
    %c0_i32 = arith.constant 0 : i32
    %c0_i32_0 = arith.constant 0 : i32
    %c0_i32_1 = arith.constant 0 : i32
    %c0_i32_2 = arith.constant 0 : i32
    %c0_i32_3 = arith.constant 0 : i32
    %c0_i32_4 = arith.constant 0 : i32
    %0 = tpu.memref_slice %arg2[%c0_i32, %c0_i32_2, %c0_i32_3, %c0_i32_4] : memref<3x3x128x128xbf16, #tpu.memory_space<any>> -> memref<1x3x128x128xbf16, #tpu.memory_space<any>>
    %1 = tpu.memref_squeeze %0 : memref<1x3x128x128xbf16, #tpu.memory_space<any>> -> memref<3x128x128xbf16, #tpu.memory_space<any>>
    %c0_i32_5 = arith.constant 0 : i32
    %c0_i32_6 = arith.constant 0 : i32
    %c0_i32_7 = arith.constant 0 : i32
    %2 = tpu.memref_slice %arg4[%c0_i32_0, %c0_i32_5, %c0_i32_6, %c0_i32_7] : memref<3x3x128x128xbf16, #tpu.memory_space<vmem>> -> memref<1x3x128x128xbf16, #tpu.memory_space<vmem>>
    %3 = tpu.memref_squeeze %2 : memref<1x3x128x128xbf16, #tpu.memory_space<vmem>> -> memref<3x128x128xbf16, #tpu.memory_space<vmem>>
    %4 = tpu.memref_slice %arg5[%c0_i32_1] : memref<3x!tpu.dma_semaphore, #tpu.memory_space<semaphore_mem>> -> memref<1x!tpu.dma_semaphore, #tpu.memory_space<semaphore_mem>>
    %5 = tpu.memref_squeeze %4 : memref<1x!tpu.dma_semaphore, #tpu.memory_space<semaphore_mem>> -> memref<!tpu.dma_semaphore, #tpu.memory_space<semaphore_mem>>
    tpu.enqueue_dma source(%1 : memref<3x128x128xbf16, #tpu.memory_space<any>>) target(%3 : memref<3x128x128xbf16, #tpu.memory_space<vmem>>) target_semaphore(%5 : memref<!tpu.dma_semaphore, #tpu.memory_space<semaphore_mem>>)
    %c1_i32 = arith.constant 1 : i32
    %c1_i32_8 = arith.constant 1 : i32
    %c1_i32_9 = arith.constant 1 : i32
    %c0_i32_10 = arith.constant 0 : i32
    %c0_i32_11 = arith.constant 0 : i32
    %c0_i32_12 = arith.constant 0 : i32
    %6 = tpu.memref_slice %arg2[%c1_i32, %c0_i32_10, %c0_i32_11, %c0_i32_12] : memref<3x3x128x128xbf16, #tpu.memory_space<any>> -> memref<1x3x128x128xbf16, #tpu.memory_space<any>>
    %7 = tpu.memref_squeeze %6 : memref<1x3x128x128xbf16, #tpu.memory_space<any>> -> memref<3x128x128xbf16, #tpu.memory_space<any>>
    %c0_i32_13 = arith.constant 0 : i32
    %c0_i32_14 = arith.constant 0 : i32
    %c0_i32_15 = arith.constant 0 : i32
    %8 = tpu.memref_slice %arg4[%c1_i32_8, %c0_i32_13, %c0_i32_14, %c0_i32_15] : memref<3x3x128x128xbf16, #tpu.memory_space<vmem>> -> memref<1x3x128x128xbf16, #tpu.memory_space<vmem>>
    %9 = tpu.memref_squeeze %8 : memref<1x3x128x128xbf16, #tpu.memory_space<vmem>> -> memref<3x128x128xbf16, #tpu.memory_space<vmem>>
    %10 = tpu.memref_slice %arg5[%c1_i32_9] : memref<3x!tpu.dma_semaphore, #tpu.memory_space<semaphore_mem>> -> memref<1x!tpu.dma_semaphore, #tpu.memory_space<semaphore_mem>>
    %11 = tpu.memref_squeeze %10 : memref<1x!tpu.dma_semaphore, #tpu.memory_space<semaphore_mem>> -> memref<!tpu.dma_semaphore, #tpu.memory_space<semaphore_mem>>
    tpu.enqueue_dma source(%7 : memref<3x128x128xbf16, #tpu.memory_space<any>>) target(%9 : memref<3x128x128xbf16, #tpu.memory_space<vmem>>) target_semaphore(%11 : memref<!tpu.dma_semaphore, #tpu.memory_space<semaphore_mem>>)
    %c2_i32 = arith.constant 2 : i32
    %c2_i32_16 = arith.constant 2 : i32
    %c2_i32_17 = arith.constant 2 : i32
    %c0_i32_18 = arith.constant 0 : i32
    %c0_i32_19 = arith.constant 0 : i32
    %c0_i32_20 = arith.constant 0 : i32
    %12 = tpu.memref_slice %arg2[%c2_i32, %c0_i32_18, %c0_i32_19, %c0_i32_20] : memref<3x3x128x128xbf16, #tpu.memory_space<any>> -> memref<1x3x128x128xbf16, #tpu.memory_space<any>>
    %13 = tpu.memref_squeeze %12 : memref<1x3x128x128xbf16, #tpu.memory_space<any>> -> memref<3x128x128xbf16, #tpu.memory_space<any>>
    %c0_i32_21 = arith.constant 0 : i32
    %c0_i32_22 = arith.constant 0 : i32
    %c0_i32_23 = arith.constant 0 : i32
    %14 = tpu.memref_slice %arg4[%c2_i32_16, %c0_i32_21, %c0_i32_22, %c0_i32_23] : memref<3x3x128x128xbf16, #tpu.memory_space<vmem>> -> memref<1x3x128x128xbf16, #tpu.memory_space<vmem>>
    %15 = tpu.memref_squeeze %14 : memref<1x3x128x128xbf16, #tpu.memory_space<vmem>> -> memref<3x128x128xbf16, #tpu.memory_space<vmem>>
    %16 = tpu.memref_slice %arg5[%c2_i32_17] : memref<3x!tpu.dma_semaphore, #tpu.memory_space<semaphore_mem>> -> memref<1x!tpu.dma_semaphore, #tpu.memory_space<semaphore_mem>>
    %17 = tpu.memref_squeeze %16 : memref<1x!tpu.dma_semaphore, #tpu.memory_space<semaphore_mem>> -> memref<!tpu.dma_semaphore, #tpu.memory_space<semaphore_mem>>
    tpu.enqueue_dma source(%13 : memref<3x128x128xbf16, #tpu.memory_space<any>>) target(%15 : memref<3x128x128xbf16, #tpu.memory_space<vmem>>) target_semaphore(%17 : memref<!tpu.dma_semaphore, #tpu.memory_space<semaphore_mem>>)
    %c0 = arith.constant 0 : index
    %c0_24 = arith.constant 0 : index
    %18 = vector.load %arg0[%c0, %c0_24] : memref<32x128xf32, #tpu.memory_space<vmem>>, vector<32x128xf32>
    %19 = tpu.iota {dimensions = array<i32: 0>} : vector<32x1xi32>
    %c16_i32 = arith.constant 16 : i32
    %c0_i32_25 = arith.constant 0 : i32
    %20 = arith.cmpi eq, %c16_i32, %c0_i32_25 : i32
    %c1_i32_26 = arith.constant 1 : i32
    %21 = arith.select %20, %c1_i32_26, %c16_i32 : i32
    %22 = vector.broadcast %21 : i32 to vector<32x1xi32>
    %23 = arith.remsi %19, %22 : vector<32x1xi32>
    %c0_i32_27 = arith.constant 0 : i32
    %24 = vector.broadcast %c0_i32_27 : i32 to vector<32x1xi32>
    %25 = arith.cmpi ne, %23, %24 : vector<32x1xi32>
    %c0_i32_28 = arith.constant 0 : i32
    %26 = vector.broadcast %c0_i32_28 : i32 to vector<32x1xi32>
    %27 = arith.cmpi slt, %23, %26 : vector<32x1xi32>
    %c0_i32_29 = arith.constant 0 : i32
    %28 = arith.cmpi slt, %21, %c0_i32_29 : i32
    %29 = vector.broadcast %28 : i1 to vector<32x1xi1>
    %30 = vector.broadcast %29 : vector<32x1xi1> to vector<32x1xi1>
    %31 = arith.xori %27, %30 : vector<32x1xi1>
    %32 = arith.andi %31, %25 : vector<32x1xi1>
    %33 = vector.broadcast %21 : i32 to vector<32x1xi32>
    %34 = arith.addi %23, %33 : vector<32x1xi32>
    %35 = arith.select %32, %34, %23 : vector<32x1xi1>, vector<32x1xi32>
    %c0_i32_30 = arith.constant 0 : i32
    %36 = vector.broadcast %c0_i32_30 : i32 to vector<32x1xi32>
    %37 = arith.cmpi sgt, %35, %36 : vector<32x1xi32>
    %38 = arith.extui %37 : vector<32x1xi1> to vector<32x1xi32>
    %39 = arith.sitofp %38 : vector<32x1xi32> to vector<32x1xf32>
    %c15_i32 = arith.constant 15 : i32
    %40 = vector.broadcast %c15_i32 : i32 to vector<32x1xi32>
    %41 = arith.cmpi slt, %35, %40 : vector<32x1xi32>
    %42 = arith.extui %41 : vector<32x1xi1> to vector<32x1xi32>
    %43 = arith.sitofp %42 : vector<32x1xi32> to vector<32x1xf32>
    %c0_i32_31 = arith.constant 0 : i32
    %c0_i32_32 = arith.constant 0 : i32
    %c0_i32_33 = arith.constant 0 : i32
    %c0_i32_34 = arith.constant 0 : i32
    %c0_i32_35 = arith.constant 0 : i32
    %c0_i32_36 = arith.constant 0 : i32
    %44 = tpu.memref_slice %arg2[%c0_i32_31, %c0_i32_34, %c0_i32_35, %c0_i32_36] : memref<3x3x128x128xbf16, #tpu.memory_space<any>> -> memref<1x3x128x128xbf16, #tpu.memory_space<any>>
    %45 = tpu.memref_squeeze %44 : memref<1x3x128x128xbf16, #tpu.memory_space<any>> -> memref<3x128x128xbf16, #tpu.memory_space<any>>
    %c0_i32_37 = arith.constant 0 : i32
    %c0_i32_38 = arith.constant 0 : i32
    %c0_i32_39 = arith.constant 0 : i32
    %46 = tpu.memref_slice %arg4[%c0_i32_32, %c0_i32_37, %c0_i32_38, %c0_i32_39] : memref<3x3x128x128xbf16, #tpu.memory_space<vmem>> -> memref<1x3x128x128xbf16, #tpu.memory_space<vmem>>
    %47 = tpu.memref_squeeze %46 : memref<1x3x128x128xbf16, #tpu.memory_space<vmem>> -> memref<3x128x128xbf16, #tpu.memory_space<vmem>>
    %48 = tpu.memref_slice %arg5[%c0_i32_33] : memref<3x!tpu.dma_semaphore, #tpu.memory_space<semaphore_mem>> -> memref<1x!tpu.dma_semaphore, #tpu.memory_space<semaphore_mem>>
    %49 = tpu.memref_squeeze %48 : memref<1x!tpu.dma_semaphore, #tpu.memory_space<semaphore_mem>> -> memref<!tpu.dma_semaphore, #tpu.memory_space<semaphore_mem>>
    tpu.wait_dma2 semaphore(%49 : memref<!tpu.dma_semaphore, #tpu.memory_space<semaphore_mem>>) src(%45 : memref<3x128x128xbf16, #tpu.memory_space<any>>) dst(%47 : memref<3x128x128xbf16, #tpu.memory_space<vmem>>)
    %c1_i32_40 = arith.constant 1 : i32
    %50 = tpu.dynamic_rotate %18 by %c1_i32_40 dim 0 : vector<32x128xf32>, i32 -> vector<32x128xf32>
    %51 = vector.broadcast %39 : vector<32x1xf32> to vector<32x128xf32>
    %52 = arith.mulf %50, %51 : vector<32x128xf32>
    %c31_i32 = arith.constant 31 : i32
    %53 = tpu.dynamic_rotate %18 by %c31_i32 dim 0 : vector<32x128xf32>, i32 -> vector<32x128xf32>
    %54 = vector.broadcast %43 : vector<32x1xf32> to vector<32x128xf32>
    %55 = arith.mulf %53, %54 : vector<32x128xf32>
    %56 = arith.truncf %18 : vector<32x128xf32> to vector<32x128xbf16>
    %c0_41 = arith.constant 0 : index
    %c1 = arith.constant 1 : index
    %c0_42 = arith.constant 0 : index
    %c0_43 = arith.constant 0 : index
    %57 = vector.load %arg4[%c0_41, %c1, %c0_42, %c0_43] : memref<3x3x128x128xbf16, #tpu.memory_space<vmem>>, vector<1x1x128x128xbf16>
    %58 = vector.shape_cast %57 : vector<1x1x128x128xbf16> to vector<128x128xbf16>
    %cst = arith.constant dense<0.000000e+00> : vector<32x128xf32>
    %59 = tpu.matmul %56, %58, %cst {dimension_numbers = #tpu.dot_dimension_numbers<[1], [0], [0], [1], [0, 0, 1, 1], [], []>} : vector<32x128xbf16>, vector<128x128xbf16>, vector<32x128xf32> -> vector<32x128xf32>
    %60 = arith.truncf %52 : vector<32x128xf32> to vector<32x128xbf16>
    %c0_44 = arith.constant 0 : index
    %c0_45 = arith.constant 0 : index
    %c0_46 = arith.constant 0 : index
    %c0_47 = arith.constant 0 : index
    %61 = vector.load %arg4[%c0_44, %c0_45, %c0_46, %c0_47] : memref<3x3x128x128xbf16, #tpu.memory_space<vmem>>, vector<1x1x128x128xbf16>
    %62 = vector.shape_cast %61 : vector<1x1x128x128xbf16> to vector<128x128xbf16>
    %cst_48 = arith.constant dense<0.000000e+00> : vector<32x128xf32>
    %63 = tpu.matmul %60, %62, %cst_48 {dimension_numbers = #tpu.dot_dimension_numbers<[1], [0], [0], [1], [0, 0, 1, 1], [], []>} : vector<32x128xbf16>, vector<128x128xbf16>, vector<32x128xf32> -> vector<32x128xf32>
    %64 = arith.addf %59, %63 : vector<32x128xf32>
    %65 = arith.truncf %55 : vector<32x128xf32> to vector<32x128xbf16>
    %c0_49 = arith.constant 0 : index
    %c2 = arith.constant 2 : index
    %c0_50 = arith.constant 0 : index
    %c0_51 = arith.constant 0 : index
    %66 = vector.load %arg4[%c0_49, %c2, %c0_50, %c0_51] : memref<3x3x128x128xbf16, #tpu.memory_space<vmem>>, vector<1x1x128x128xbf16>
    %67 = vector.shape_cast %66 : vector<1x1x128x128xbf16> to vector<128x128xbf16>
    %cst_52 = arith.constant dense<0.000000e+00> : vector<32x128xf32>
    %68 = tpu.matmul %65, %67, %cst_52 {dimension_numbers = #tpu.dot_dimension_numbers<[1], [0], [0], [1], [0, 0, 1, 1], [], []>} : vector<32x128xbf16>, vector<128x128xbf16>, vector<32x128xf32> -> vector<32x128xf32>
    %69 = arith.addf %64, %68 : vector<32x128xf32>
    %c0_53 = arith.constant 0 : index
    %c0_54 = arith.constant 0 : index
    %70 = vector.load %arg1[%c0_53, %c0_54] : memref<5x128xf32, #tpu.memory_space<vmem>>, vector<1x128xf32>
    %71 = vector.broadcast %70 : vector<1x128xf32> to vector<32x128xf32>
    %72 = arith.addf %69, %71 : vector<32x128xf32>
    %c1_i32_55 = arith.constant 1 : i32
    %c1_i32_56 = arith.constant 1 : i32
    %c1_i32_57 = arith.constant 1 : i32
    %c0_i32_58 = arith.constant 0 : i32
    %c0_i32_59 = arith.constant 0 : i32
    %c0_i32_60 = arith.constant 0 : i32
    %73 = tpu.memref_slice %arg2[%c1_i32_55, %c0_i32_58, %c0_i32_59, %c0_i32_60] : memref<3x3x128x128xbf16, #tpu.memory_space<any>> -> memref<1x3x128x128xbf16, #tpu.memory_space<any>>
    %74 = tpu.memref_squeeze %73 : memref<1x3x128x128xbf16, #tpu.memory_space<any>> -> memref<3x128x128xbf16, #tpu.memory_space<any>>
    %c0_i32_61 = arith.constant 0 : i32
    %c0_i32_62 = arith.constant 0 : i32
    %c0_i32_63 = arith.constant 0 : i32
    %75 = tpu.memref_slice %arg4[%c1_i32_56, %c0_i32_61, %c0_i32_62, %c0_i32_63] : memref<3x3x128x128xbf16, #tpu.memory_space<vmem>> -> memref<1x3x128x128xbf16, #tpu.memory_space<vmem>>
    %76 = tpu.memref_squeeze %75 : memref<1x3x128x128xbf16, #tpu.memory_space<vmem>> -> memref<3x128x128xbf16, #tpu.memory_space<vmem>>
    %77 = tpu.memref_slice %arg5[%c1_i32_57] : memref<3x!tpu.dma_semaphore, #tpu.memory_space<semaphore_mem>> -> memref<1x!tpu.dma_semaphore, #tpu.memory_space<semaphore_mem>>
    %78 = tpu.memref_squeeze %77 : memref<1x!tpu.dma_semaphore, #tpu.memory_space<semaphore_mem>> -> memref<!tpu.dma_semaphore, #tpu.memory_space<semaphore_mem>>
    tpu.wait_dma2 semaphore(%78 : memref<!tpu.dma_semaphore, #tpu.memory_space<semaphore_mem>>) src(%74 : memref<3x128x128xbf16, #tpu.memory_space<any>>) dst(%76 : memref<3x128x128xbf16, #tpu.memory_space<vmem>>)
    %c1_i32_64 = arith.constant 1 : i32
    %79 = tpu.dynamic_rotate %72 by %c1_i32_64 dim 0 : vector<32x128xf32>, i32 -> vector<32x128xf32>
    %80 = vector.broadcast %39 : vector<32x1xf32> to vector<32x128xf32>
    %81 = arith.mulf %79, %80 : vector<32x128xf32>
    %c31_i32_65 = arith.constant 31 : i32
    %82 = tpu.dynamic_rotate %72 by %c31_i32_65 dim 0 : vector<32x128xf32>, i32 -> vector<32x128xf32>
    %83 = vector.broadcast %43 : vector<32x1xf32> to vector<32x128xf32>
    %84 = arith.mulf %82, %83 : vector<32x128xf32>
    %85 = arith.truncf %72 : vector<32x128xf32> to vector<32x128xbf16>
    %c1_66 = arith.constant 1 : index
    %c1_67 = arith.constant 1 : index
    %c0_68 = arith.constant 0 : index
    %c0_69 = arith.constant 0 : index
    %86 = vector.load %arg4[%c1_66, %c1_67, %c0_68, %c0_69] : memref<3x3x128x128xbf16, #tpu.memory_space<vmem>>, vector<1x1x128x128xbf16>
    %87 = vector.shape_cast %86 : vector<1x1x128x128xbf16> to vector<128x128xbf16>
    %cst_70 = arith.constant dense<0.000000e+00> : vector<32x128xf32>
    %88 = tpu.matmul %85, %87, %cst_70 {dimension_numbers = #tpu.dot_dimension_numbers<[1], [0], [0], [1], [0, 0, 1, 1], [], []>} : vector<32x128xbf16>, vector<128x128xbf16>, vector<32x128xf32> -> vector<32x128xf32>
    %89 = arith.truncf %81 : vector<32x128xf32> to vector<32x128xbf16>
    %c1_71 = arith.constant 1 : index
    %c0_72 = arith.constant 0 : index
    %c0_73 = arith.constant 0 : index
    %c0_74 = arith.constant 0 : index
    %90 = vector.load %arg4[%c1_71, %c0_72, %c0_73, %c0_74] : memref<3x3x128x128xbf16, #tpu.memory_space<vmem>>, vector<1x1x128x128xbf16>
    %91 = vector.shape_cast %90 : vector<1x1x128x128xbf16> to vector<128x128xbf16>
    %cst_75 = arith.constant dense<0.000000e+00> : vector<32x128xf32>
    %92 = tpu.matmul %89, %91, %cst_75 {dimension_numbers = #tpu.dot_dimension_numbers<[1], [0], [0], [1], [0, 0, 1, 1], [], []>} : vector<32x128xbf16>, vector<128x128xbf16>, vector<32x128xf32> -> vector<32x128xf32>
    %93 = arith.addf %88, %92 : vector<32x128xf32>
    %94 = arith.truncf %84 : vector<32x128xf32> to vector<32x128xbf16>
    %c1_76 = arith.constant 1 : index
    %c2_77 = arith.constant 2 : index
    %c0_78 = arith.constant 0 : index
    %c0_79 = arith.constant 0 : index
    %95 = vector.load %arg4[%c1_76, %c2_77, %c0_78, %c0_79] : memref<3x3x128x128xbf16, #tpu.memory_space<vmem>>, vector<1x1x128x128xbf16>
    %96 = vector.shape_cast %95 : vector<1x1x128x128xbf16> to vector<128x128xbf16>
    %cst_80 = arith.constant dense<0.000000e+00> : vector<32x128xf32>
    %97 = tpu.matmul %94, %96, %cst_80 {dimension_numbers = #tpu.dot_dimension_numbers<[1], [0], [0], [1], [0, 0, 1, 1], [], []>} : vector<32x128xbf16>, vector<128x128xbf16>, vector<32x128xf32> -> vector<32x128xf32>
    %98 = arith.addf %93, %97 : vector<32x128xf32>
    %c1_81 = arith.constant 1 : index
    %c0_82 = arith.constant 0 : index
    %99 = vector.load %arg1[%c1_81, %c0_82] : memref<5x128xf32, #tpu.memory_space<vmem>>, vector<1x128xf32>
    %c2_83 = arith.constant 2 : index
    %c0_84 = arith.constant 0 : index
    %100 = vector.load %arg1[%c2_83, %c0_84] : memref<5x128xf32, #tpu.memory_space<vmem>>, vector<1x128xf32>
    %cst_85 = arith.constant dense<0.000000e+00> : vector<128xf32>
    %101 = vector.multi_reduction <add>, %98, %cst_85 [0] : vector<32x128xf32> to vector<128xf32>
    %102 = vector.shape_cast %101 : vector<128xf32> to vector<1x128xf32>
    %c8_i32 = arith.constant 8 : i32
    %103 = tpu.dynamic_rotate %102 by %c8_i32 dim 1 : vector<1x128xf32>, i32 -> vector<1x128xf32>
    %104 = arith.addf %102, %103 : vector<1x128xf32>
    %c16_i32_86 = arith.constant 16 : i32
    %105 = tpu.dynamic_rotate %104 by %c16_i32_86 dim 1 : vector<1x128xf32>, i32 -> vector<1x128xf32>
    %106 = arith.addf %104, %105 : vector<1x128xf32>
    %c32_i32 = arith.constant 32 : i32
    %107 = tpu.dynamic_rotate %106 by %c32_i32 dim 1 : vector<1x128xf32>, i32 -> vector<1x128xf32>
    %108 = arith.addf %106, %107 : vector<1x128xf32>
    %c64_i32 = arith.constant 64 : i32
    %109 = tpu.dynamic_rotate %108 by %c64_i32 dim 1 : vector<1x128xf32>, i32 -> vector<1x128xf32>
    %110 = arith.addf %108, %109 : vector<1x128xf32>
    %111 = arith.mulf %98, %98 : vector<32x128xf32>
    %cst_87 = arith.constant dense<0.000000e+00> : vector<128xf32>
    %112 = vector.multi_reduction <add>, %111, %cst_87 [0] : vector<32x128xf32> to vector<128xf32>
    %113 = vector.shape_cast %112 : vector<128xf32> to vector<1x128xf32>
    %c8_i32_88 = arith.constant 8 : i32
    %114 = tpu.dynamic_rotate %113 by %c8_i32_88 dim 1 : vector<1x128xf32>, i32 -> vector<1x128xf32>
    %115 = arith.addf %113, %114 : vector<1x128xf32>
    %c16_i32_89 = arith.constant 16 : i32
    %116 = tpu.dynamic_rotate %115 by %c16_i32_89 dim 1 : vector<1x128xf32>, i32 -> vector<1x128xf32>
    %117 = arith.addf %115, %116 : vector<1x128xf32>
    %c32_i32_90 = arith.constant 32 : i32
    %118 = tpu.dynamic_rotate %117 by %c32_i32_90 dim 1 : vector<1x128xf32>, i32 -> vector<1x128xf32>
    %119 = arith.addf %117, %118 : vector<1x128xf32>
    %c64_i32_91 = arith.constant 64 : i32
    %120 = tpu.dynamic_rotate %119 by %c64_i32_91 dim 1 : vector<1x128xf32>, i32 -> vector<1x128xf32>
    %121 = arith.addf %119, %120 : vector<1x128xf32>
    %cst_92 = arith.constant 0.001953125 : f32
    %122 = vector.broadcast %cst_92 : f32 to vector<1x128xf32>
    %123 = arith.mulf %110, %122 : vector<1x128xf32>
    %cst_93 = arith.constant 0.001953125 : f32
    %124 = vector.broadcast %cst_93 : f32 to vector<1x128xf32>
    %125 = arith.mulf %121, %124 : vector<1x128xf32>
    %126 = arith.mulf %123, %123 : vector<1x128xf32>
    %127 = arith.subf %125, %126 : vector<1x128xf32>
    %cst_94 = arith.constant 9.99999974E-6 : f32
    %128 = vector.broadcast %cst_94 : f32 to vector<1x128xf32>
    %129 = arith.addf %127, %128 : vector<1x128xf32>
    %130 = math.rsqrt %129 : vector<1x128xf32>
    %131 = vector.broadcast %123 : vector<1x128xf32> to vector<32x128xf32>
    %132 = arith.subf %98, %131 : vector<32x128xf32>
    %133 = arith.mulf %130, %99 : vector<1x128xf32>
    %134 = vector.broadcast %133 : vector<1x128xf32> to vector<32x128xf32>
    %135 = arith.mulf %132, %134 : vector<32x128xf32>
    %136 = vector.broadcast %100 : vector<1x128xf32> to vector<32x128xf32>
    %137 = arith.addf %135, %136 : vector<32x128xf32>
    %cst_95 = arith.constant 0.000000e+00 : f32
    %138 = vector.broadcast %cst_95 : f32 to vector<32x128xf32>
    %139 = arith.maximumf %137, %138 : vector<32x128xf32>
    %c2_i32_96 = arith.constant 2 : i32
    %c2_i32_97 = arith.constant 2 : i32
    %c2_i32_98 = arith.constant 2 : i32
    %c0_i32_99 = arith.constant 0 : i32
    %c0_i32_100 = arith.constant 0 : i32
    %c0_i32_101 = arith.constant 0 : i32
    %140 = tpu.memref_slice %arg2[%c2_i32_96, %c0_i32_99, %c0_i32_100, %c0_i32_101] : memref<3x3x128x128xbf16, #tpu.memory_space<any>> -> memref<1x3x128x128xbf16, #tpu.memory_space<any>>
    %141 = tpu.memref_squeeze %140 : memref<1x3x128x128xbf16, #tpu.memory_space<any>> -> memref<3x128x128xbf16, #tpu.memory_space<any>>
    %c0_i32_102 = arith.constant 0 : i32
    %c0_i32_103 = arith.constant 0 : i32
    %c0_i32_104 = arith.constant 0 : i32
    %142 = tpu.memref_slice %arg4[%c2_i32_97, %c0_i32_102, %c0_i32_103, %c0_i32_104] : memref<3x3x128x128xbf16, #tpu.memory_space<vmem>> -> memref<1x3x128x128xbf16, #tpu.memory_space<vmem>>
    %143 = tpu.memref_squeeze %142 : memref<1x3x128x128xbf16, #tpu.memory_space<vmem>> -> memref<3x128x128xbf16, #tpu.memory_space<vmem>>
    %144 = tpu.memref_slice %arg5[%c2_i32_98] : memref<3x!tpu.dma_semaphore, #tpu.memory_space<semaphore_mem>> -> memref<1x!tpu.dma_semaphore, #tpu.memory_space<semaphore_mem>>
    %145 = tpu.memref_squeeze %144 : memref<1x!tpu.dma_semaphore, #tpu.memory_space<semaphore_mem>> -> memref<!tpu.dma_semaphore, #tpu.memory_space<semaphore_mem>>
    tpu.wait_dma2 semaphore(%145 : memref<!tpu.dma_semaphore, #tpu.memory_space<semaphore_mem>>) src(%141 : memref<3x128x128xbf16, #tpu.memory_space<any>>) dst(%143 : memref<3x128x128xbf16, #tpu.memory_space<vmem>>)
    %c1_i32_105 = arith.constant 1 : i32
    %146 = tpu.dynamic_rotate %139 by %c1_i32_105 dim 0 : vector<32x128xf32>, i32 -> vector<32x128xf32>
    %147 = vector.broadcast %39 : vector<32x1xf32> to vector<32x128xf32>
    %148 = arith.mulf %146, %147 : vector<32x128xf32>
    %c31_i32_106 = arith.constant 31 : i32
    %149 = tpu.dynamic_rotate %139 by %c31_i32_106 dim 0 : vector<32x128xf32>, i32 -> vector<32x128xf32>
    %150 = vector.broadcast %43 : vector<32x1xf32> to vector<32x128xf32>
    %151 = arith.mulf %149, %150 : vector<32x128xf32>
    %152 = arith.truncf %139 : vector<32x128xf32> to vector<32x128xbf16>
    %c2_107 = arith.constant 2 : index
    %c1_108 = arith.constant 1 : index
    %c0_109 = arith.constant 0 : index
    %c0_110 = arith.constant 0 : index
    %153 = vector.load %arg4[%c2_107, %c1_108, %c0_109, %c0_110] : memref<3x3x128x128xbf16, #tpu.memory_space<vmem>>, vector<1x1x128x128xbf16>
    %154 = vector.shape_cast %153 : vector<1x1x128x128xbf16> to vector<128x128xbf16>
    %cst_111 = arith.constant dense<0.000000e+00> : vector<32x128xf32>
    %155 = tpu.matmul %152, %154, %cst_111 {dimension_numbers = #tpu.dot_dimension_numbers<[1], [0], [0], [1], [0, 0, 1, 1], [], []>} : vector<32x128xbf16>, vector<128x128xbf16>, vector<32x128xf32> -> vector<32x128xf32>
    %156 = arith.truncf %148 : vector<32x128xf32> to vector<32x128xbf16>
    %c2_112 = arith.constant 2 : index
    %c0_113 = arith.constant 0 : index
    %c0_114 = arith.constant 0 : index
    %c0_115 = arith.constant 0 : index
    %157 = vector.load %arg4[%c2_112, %c0_113, %c0_114, %c0_115] : memref<3x3x128x128xbf16, #tpu.memory_space<vmem>>, vector<1x1x128x128xbf16>
    %158 = vector.shape_cast %157 : vector<1x1x128x128xbf16> to vector<128x128xbf16>
    %cst_116 = arith.constant dense<0.000000e+00> : vector<32x128xf32>
    %159 = tpu.matmul %156, %158, %cst_116 {dimension_numbers = #tpu.dot_dimension_numbers<[1], [0], [0], [1], [0, 0, 1, 1], [], []>} : vector<32x128xbf16>, vector<128x128xbf16>, vector<32x128xf32> -> vector<32x128xf32>
    %160 = arith.addf %155, %159 : vector<32x128xf32>
    %161 = arith.truncf %151 : vector<32x128xf32> to vector<32x128xbf16>
    %c2_117 = arith.constant 2 : index
    %c2_118 = arith.constant 2 : index
    %c0_119 = arith.constant 0 : index
    %c0_120 = arith.constant 0 : index
    %162 = vector.load %arg4[%c2_117, %c2_118, %c0_119, %c0_120] : memref<3x3x128x128xbf16, #tpu.memory_space<vmem>>, vector<1x1x128x128xbf16>
    %163 = vector.shape_cast %162 : vector<1x1x128x128xbf16> to vector<128x128xbf16>
    %cst_121 = arith.constant dense<0.000000e+00> : vector<32x128xf32>
    %164 = tpu.matmul %161, %163, %cst_121 {dimension_numbers = #tpu.dot_dimension_numbers<[1], [0], [0], [1], [0, 0, 1, 1], [], []>} : vector<32x128xbf16>, vector<128x128xbf16>, vector<32x128xf32> -> vector<32x128xf32>
    %165 = arith.addf %160, %164 : vector<32x128xf32>
    %c3 = arith.constant 3 : index
    %c0_122 = arith.constant 0 : index
    %166 = vector.load %arg1[%c3, %c0_122] : memref<5x128xf32, #tpu.memory_space<vmem>>, vector<1x128xf32>
    %c4 = arith.constant 4 : index
    %c0_123 = arith.constant 0 : index
    %167 = vector.load %arg1[%c4, %c0_123] : memref<5x128xf32, #tpu.memory_space<vmem>>, vector<1x128xf32>
    %cst_124 = arith.constant dense<0.000000e+00> : vector<128xf32>
    %168 = vector.multi_reduction <add>, %165, %cst_124 [0] : vector<32x128xf32> to vector<128xf32>
    %169 = vector.shape_cast %168 : vector<128xf32> to vector<1x128xf32>
    %c8_i32_125 = arith.constant 8 : i32
    %170 = tpu.dynamic_rotate %169 by %c8_i32_125 dim 1 : vector<1x128xf32>, i32 -> vector<1x128xf32>
    %171 = arith.addf %169, %170 : vector<1x128xf32>
    %c16_i32_126 = arith.constant 16 : i32
    %172 = tpu.dynamic_rotate %171 by %c16_i32_126 dim 1 : vector<1x128xf32>, i32 -> vector<1x128xf32>
    %173 = arith.addf %171, %172 : vector<1x128xf32>
    %c32_i32_127 = arith.constant 32 : i32
    %174 = tpu.dynamic_rotate %173 by %c32_i32_127 dim 1 : vector<1x128xf32>, i32 -> vector<1x128xf32>
    %175 = arith.addf %173, %174 : vector<1x128xf32>
    %c64_i32_128 = arith.constant 64 : i32
    %176 = tpu.dynamic_rotate %175 by %c64_i32_128 dim 1 : vector<1x128xf32>, i32 -> vector<1x128xf32>
    %177 = arith.addf %175, %176 : vector<1x128xf32>
    %178 = arith.mulf %165, %165 : vector<32x128xf32>
    %cst_129 = arith.constant dense<0.000000e+00> : vector<128xf32>
    %179 = vector.multi_reduction <add>, %178, %cst_129 [0] : vector<32x128xf32> to vector<128xf32>
    %180 = vector.shape_cast %179 : vector<128xf32> to vector<1x128xf32>
    %c8_i32_130 = arith.constant 8 : i32
    %181 = tpu.dynamic_rotate %180 by %c8_i32_130 dim 1 : vector<1x128xf32>, i32 -> vector<1x128xf32>
    %182 = arith.addf %180, %181 : vector<1x128xf32>
    %c16_i32_131 = arith.constant 16 : i32
    %183 = tpu.dynamic_rotate %182 by %c16_i32_131 dim 1 : vector<1x128xf32>, i32 -> vector<1x128xf32>
    %184 = arith.addf %182, %183 : vector<1x128xf32>
    %c32_i32_132 = arith.constant 32 : i32
    %185 = tpu.dynamic_rotate %184 by %c32_i32_132 dim 1 : vector<1x128xf32>, i32 -> vector<1x128xf32>
    %186 = arith.addf %184, %185 : vector<1x128xf32>
    %c64_i32_133 = arith.constant 64 : i32
    %187 = tpu.dynamic_rotate %186 by %c64_i32_133 dim 1 : vector<1x128xf32>, i32 -> vector<1x128xf32>
    %188 = arith.addf %186, %187 : vector<1x128xf32>
    %cst_134 = arith.constant 0.001953125 : f32
    %189 = vector.broadcast %cst_134 : f32 to vector<1x128xf32>
    %190 = arith.mulf %177, %189 : vector<1x128xf32>
    %cst_135 = arith.constant 0.001953125 : f32
    %191 = vector.broadcast %cst_135 : f32 to vector<1x128xf32>
    %192 = arith.mulf %188, %191 : vector<1x128xf32>
    %193 = arith.mulf %190, %190 : vector<1x128xf32>
    %194 = arith.subf %192, %193 : vector<1x128xf32>
    %cst_136 = arith.constant 9.99999974E-6 : f32
    %195 = vector.broadcast %cst_136 : f32 to vector<1x128xf32>
    %196 = arith.addf %194, %195 : vector<1x128xf32>
    %197 = math.rsqrt %196 : vector<1x128xf32>
    %198 = vector.broadcast %190 : vector<1x128xf32> to vector<32x128xf32>
    %199 = arith.subf %165, %198 : vector<32x128xf32>
    %200 = arith.mulf %197, %166 : vector<1x128xf32>
    %201 = vector.broadcast %200 : vector<1x128xf32> to vector<32x128xf32>
    %202 = arith.mulf %199, %201 : vector<32x128xf32>
    %203 = vector.broadcast %167 : vector<1x128xf32> to vector<32x128xf32>
    %204 = arith.addf %202, %203 : vector<32x128xf32>
    %cst_137 = arith.constant 0.000000e+00 : f32
    %205 = vector.broadcast %cst_137 : f32 to vector<32x128xf32>
    %206 = arith.maximumf %204, %205 : vector<32x128xf32>
    %c0_138 = arith.constant 0 : index
    %c0_139 = arith.constant 0 : index
    %207 = vector.load %arg3[%c0_138, %c0_139] : memref<32x128xf32, #tpu.memory_space<vmem>>, vector<32x128xf32>
    tpu.vector_store %arg3[%c0_138, %c0_139], %206 {strides = array<i32>} : memref<32x128xf32, #tpu.memory_space<vmem>>, vector<32x128xf32>,
    return
  }
}

</mosaic_0001>

<llo_original>
// kernel: upconvblock_forward.1
$region0: #{upconvblock_forward.1}
  #allocation0 [shape = 'u32[]', space=smem, size = 0x4, offset = 0x4, fixed_abs, tag = 'smem constant byte address 0x4 - core index']
  #allocation1 [shape = 'u32[144,128]{1,0:T(1,128)}', space=vmem, size = 0x12000, scoped, tag = 'internal scratch']
  #allocation2 [shape = 'bf16[3,3,128,128]{3,2,1,0:T(16,128)(2,1)}', space=vmem, size = 0x48000, scoped, tag = 'scratch operand']
  #allocation3 [shape = 's32[3]{0}', space=sflag, size = 0xc, scoped, tag = 'scratch operand']
  #allocation4 [shape = 's32[]', space=sflag, size = 0x4, offset = 0, fixed_abs, tag = 'sflag constant byte address 0x0 - dummy sync flag']
  #allocation5 [shape = 's32[]', space=sflag, size = 0x4, offset = 0, fixed_abs, tag = 'sflag constant byte address 0x0 - dummy sync flag']
  #allocation6 [shape = 's32[]', space=sflag, size = 0x4, offset = 0, fixed_abs, tag = 'sflag constant byte address 0x0 - dummy sync flag']
  %s0 = inlined_call_operand.vmem [shape: f32[32,128], index: 0, kind: input, shape index: {}]
  %s1 = inlined_call_operand.vmem [shape: f32[5,128], index: 1, kind: input, shape index: {}]
  %s2 = inlined_call_operand.vmem [shape: bf16[3,3,128,128], index: 2, kind: input, shape index: {}]
  %s3 = inlined_call_operand.vmem [shape: f32[32,128], index: 3, kind: output, shape index: {}]
  %s4 = sld [smem:[#allocation0]]
  $region120: #{upconvblock_forward.1} parent=0
    _
  %s6 = ssub.s32 1, %s4
  %s7 = scalar_select 0, %s6, %s4
  // Predicated region
  $region2: #{upconvblock_forward.1} parent=0 // pred_check
    _
  $region3: #{upconvblock_forward.1} parent=0 // pred_check_branch
    %9 = sbr.rel (0) target = $region5
  $region4: #{upconvblock_forward.1} parent=0 // pred_region
    _
  $region5: #{upconvblock_forward.1} parent=0 // pred_fallthru
    _
  // Predicated region
  $region6: #{upconvblock_forward.1} parent=0 // pred_check
    _
  $region7: #{upconvblock_forward.1} parent=0 // pred_check_branch
    %11 = sbr.rel (0) target = $region9
  $region8: #{upconvblock_forward.1} parent=0 // pred_region
    _
  $region9: #{upconvblock_forward.1} parent=0 // pred_fallthru
    _
  %p14 = scmp.lt.u32.totalorder 192, 8
  %p15 = pneg %p14
  // Predicated region
  $region10: #{upconvblock_forward.1} parent=0 // pred_check
    _
  $region11: #{upconvblock_forward.1} parent=0 // pred_check_branch
    %17 = sbr.rel (%p14) target = $region13
  $region12: #{upconvblock_forward.1} parent=0 // pred_region
    %s32 = sand.u32 192, 7
    %p33 = scmp.eq.s32.totalorder %s32, 0
    // Predicated region
    $region25: #{upconvblock_forward.1} parent=12 // pred_check
      %p34 = pneg %p33
    $region26: #{upconvblock_forward.1} parent=12 // pred_check_branch
      %36 = sbr.rel (%p34) target = $region28
    $region27: #{upconvblock_forward.1} parent=12 // pred_region
      loop: start=0, step=1, limit=1
      $region29: #{upconvblock_forward.1} parent=27 // loop_pre_header
        _
      $region30: #{upconvblock_forward.1} parent=27 // loop_header
        %s38 = sphi 0, %s42
        %p39 = scmp.ge.s32.totalorder %s38, 1
        %s43 = sphi %s2, %s2
        %s44 = sphi [#allocation2], [#allocation2]
      $region31: #{upconvblock_forward.1} parent=27 // loop_header_branch
        %41 = sbr.rel (%p39) target = $region35
      $region32: #{upconvblock_forward.1} parent=27 // loop_body
        %v45 = vld [vmem:[%s43] sm:$0xff]
        %46 = vst [vmem:[%s44] sm:$0xff] %v45
        %v47 = vld [vmem:[%s43 + $0x8] sm:$0xff]
        %48 = vst [vmem:[%s44 + $0x8] sm:$0xff] %v47
        %v49 = vld [vmem:[%s43 + $0x10] sm:$0xff]
        %50 = vst [vmem:[%s44 + $0x10] sm:$0xff] %v49
        %v51 = vld [vmem:[%s43 + $0x18] sm:$0xff]
        %52 = vst [vmem:[%s44 + $0x18] sm:$0xff] %v51
        %v53 = vld [vmem:[%s43 + $0x20] sm:$0xff]
        %54 = vst [vmem:[%s44 + $0x20] sm:$0xff] %v53
        %v55 = vld [vmem:[%s43 + $0x28] sm:$0xff]
        %56 = vst [vmem:[%s44 + $0x28] sm:$0xff] %v55
        %v57 = vld [vmem:[%s43 + $0x30] sm:$0xff]
        %58 = vst [vmem:[%s44 + $0x30] sm:$0xff] %v57
        %v59 = vld [vmem:[%s43 + $0x38] sm:$0xff]
        %60 = vst [vmem:[%s44 + $0x38] sm:$0xff] %v59
        %v61 = vld [vmem:[%s43 + $0x40] sm:$0xff]
        %62 = vst [vmem:[%s44 + $0x40] sm:$0xff] %v61
        %v63 = vld [vmem:[%s43 + $0x48] sm:$0xff]
        %64 = vst [vmem:[%s44 + $0x48] sm:$0xff] %v63
        %v65 = vld [vmem:[%s43 + $0x50] sm:$0xff]
        %66 = vst [vmem:[%s44 + $0x50] sm:$0xff] %v65
        %v67 = vld [vmem:[%s43 + $0x58] sm:$0xff]
        %68 = vst [vmem:[%s44 + $0x58] sm:$0xff] %v67
        %v69 = vld [vmem:[%s43 + $0x60] sm:$0xff]
        %70 = vst [vmem:[%s44 + $0x60] sm:$0xff] %v69
        %v71 = vld [vmem:[%s43 + $0x68] sm:$0xff]
        %72 = vst [vmem:[%s44 + $0x68] sm:$0xff] %v71
        %v73 = vld [vmem:[%s43 + $0x70] sm:$0xff]
        %74 = vst [vmem:[%s44 + $0x70] sm:$0xff] %v73
        %v75 = vld [vmem:[%s43 + $0x78] sm:$0xff]
        %76 = vst [vmem:[%s44 + $0x78] sm:$0xff] %v75
        %v77 = vld [vmem:[%s43 + $0x80] sm:$0xff]
        %78 = vst [vmem:[%s44 + $0x80] sm:$0xff] %v77
        %v79 = vld [vmem:[%s43 + $0x88] sm:$0xff]
        %80 = vst [vmem:[%s44 + $0x88] sm:$0xff] %v79
        %v81 = vld [vmem:[%s43 + $0x90] sm:$0xff]
        %82 = vst [vmem:[%s44 + $0x90] sm:$0xff] %v81
        %v83 = vld [vmem:[%s43 + $0x98] sm:$0xff]
        %84 = vst [vmem:[%s44 + $0x98] sm:$0xff] %v83
        %v85 = vld [vmem:[%s43 + $0xa0] sm:$0xff]
        %86 = vst [vmem:[%s44 + $0xa0] sm:$0xff] %v85
        %v87 = vld [vmem:[%s43 + $0xa8] sm:$0xff]
        %88 = vst [vmem:[%s44 + $0xa8] sm:$0xff] %v87
        %v89 = vld [vmem:[%s43 + $0xb0] sm:$0xff]
        %90 = vst [vmem:[%s44 + $0xb0] sm:$0xff] %v89
        %v91 = vld [vmem:[%s43 + $0xb8] sm:$0xff]
        %92 = vst [vmem:[%s44 + $0xb8] sm:$0xff] %v91
      $region33: #{upconvblock_forward.1} parent=27 // loop_footer
        %s42 = sadd.s32 1, %s38
      $region34: #{upconvblock_forward.1} parent=27 // loop_footer_branch
        %37 = sbr.rel target = $region30
      $region35: #{upconvblock_forward.1} parent=27 // loop_exit
        _
    $region28: #{upconvblock_forward.1} parent=12 // pred_fallthru
      _
    %p93 = pneg %p33
    // Predicated region
    $region36: #{upconvblock_forward.1} parent=12 // pred_check
      _
    $region37: #{upconvblock_forward.1} parent=12 // pred_check_branch
      %95 = sbr.rel (%p33) target = $region39
    $region38: #{upconvblock_forward.1} parent=12 // pred_region
      %s96 = sand.u32 192, 7
    $region39: #{upconvblock_forward.1} parent=12 // pred_fallthru
      _
  $region13: #{upconvblock_forward.1} parent=0 // pred_fallthru
    _
  // Predicated region
  $region14: #{upconvblock_forward.1} parent=0 // pred_check
    %p18 = pneg %p14
  $region15: #{upconvblock_forward.1} parent=0 // pred_check_branch
    %20 = sbr.rel (%p18) target = $region17
  $region16: #{upconvblock_forward.1} parent=0 // pred_region
    %s21 = sshllo.u32 0, 192
    loop: start=0, step=1, limit=1
    $region18: #{upconvblock_forward.1} parent=16 // loop_pre_header
      _
    $region19: #{upconvblock_forward.1} parent=16 // loop_header
      %s23 = sphi 0, %s27
      %p24 = scmp.ge.s32.totalorder %s23, 1
      %s28 = sphi %s2, %s2
      %s29 = sphi [#allocation2], [#allocation2]
    $region20: #{upconvblock_forward.1} parent=16 // loop_header_branch
      %26 = sbr.rel (%p24) target = $region24
    $region21: #{upconvblock_forward.1} parent=16 // loop_body
      %v30 = vld [vmem:[%s28] sm:%s21]
      %31 = vst [vmem:[%s29] sm:%s21] %v30
    $region22: #{upconvblock_forward.1} parent=16 // loop_footer
      %s27 = sadd.s32 1, %s23
    $region23: #{upconvblock_forward.1} parent=16 // loop_footer_branch
      %22 = sbr.rel target = $region19
    $region24: #{upconvblock_forward.1} parent=16 // loop_exit
      _
  $region17: #{upconvblock_forward.1} parent=0 // pred_fallthru
    _
  // Predicated region
  $region40: #{upconvblock_forward.1} parent=0 // pred_check
    _
  $region41: #{upconvblock_forward.1} parent=0 // pred_check_branch
    %99 = sbr.rel (0) target = $region43
  $region42: #{upconvblock_forward.1} parent=0 // pred_region
    %100 = vsyncadd [#allocation3], 3072
  $region43: #{upconvblock_forward.1} parent=0 // pred_fallthru
    _
  %s101 = scalar_lea.vmem %s2, 192
  %s102 = scalar_lea.vmem [#allocation2], 192
  %s103 = scalar_lea.sflag [#allocation3], 1
  %p105 = scmp.lt.u32.totalorder 192, 8
  %p106 = pneg %p105
  // Predicated region
  $region44: #{upconvblock_forward.1} parent=0 // pred_check
    _
  $region45: #{upconvblock_forward.1} parent=0 // pred_check_branch
    %108 = sbr.rel (%p105) target = $region47
  $region46: #{upconvblock_forward.1} parent=0 // pred_region
    %s123 = sand.u32 192, 7
    %p124 = scmp.eq.s32.totalorder %s123, 0
    // Predicated region
    $region59: #{upconvblock_forward.1} parent=46 // pred_check
      %p125 = pneg %p124
    $region60: #{upconvblock_forward.1} parent=46 // pred_check_branch
      %127 = sbr.rel (%p125) target = $region62
    $region61: #{upconvblock_forward.1} parent=46 // pred_region
      loop: start=0, step=1, limit=1
      $region63: #{upconvblock_forward.1} parent=61 // loop_pre_header
        _
      $region64: #{upconvblock_forward.1} parent=61 // loop_header
        %s129 = sphi 0, %s133
        %p130 = scmp.ge.s32.totalorder %s129, 1
        %s134 = sphi %s101, %s101
        %s135 = sphi %s102, %s102
      $region65: #{upconvblock_forward.1} parent=61 // loop_header_branch
        %132 = sbr.rel (%p130) target = $region69
      $region66: #{upconvblock_forward.1} parent=61 // loop_body
        %v136 = vld [vmem:[%s134] sm:$0xff]
        %137 = vst [vmem:[%s135] sm:$0xff] %v136
        %v138 = vld [vmem:[%s134 + $0x8] sm:$0xff]
        %139 = vst [vmem:[%s135 + $0x8] sm:$0xff] %v138
        %v140 = vld [vmem:[%s134 + $0x10] sm:$0xff]
        %141 = vst [vmem:[%s135 + $0x10] sm:$0xff] %v140
        %v142 = vld [vmem:[%s134 + $0x18] sm:$0xff]
        %143 = vst [vmem:[%s135 + $0x18] sm:$0xff] %v142
        %v144 = vld [vmem:[%s134 + $0x20] sm:$0xff]
        %145 = vst [vmem:[%s135 + $0x20] sm:$0xff] %v144
        %v146 = vld [vmem:[%s134 + $0x28] sm:$0xff]
        %147 = vst [vmem:[%s135 + $0x28] sm:$0xff] %v146
        %v148 = vld [vmem:[%s134 + $0x30] sm:$0xff]
        %149 = vst [vmem:[%s135 + $0x30] sm:$0xff] %v148
        %v150 = vld [vmem:[%s134 + $0x38] sm:$0xff]
        %151 = vst [vmem:[%s135 + $0x38] sm:$0xff] %v150
        %v152 = vld [vmem:[%s134 + $0x40] sm:$0xff]
        %153 = vst [vmem:[%s135 + $0x40] sm:$0xff] %v152
        %v154 = vld [vmem:[%s134 + $0x48] sm:$0xff]
        %155 = vst [vmem:[%s135 + $0x48] sm:$0xff] %v154
        %v156 = vld [vmem:[%s134 + $0x50] sm:$0xff]
        %157 = vst [vmem:[%s135 + $0x50] sm:$0xff] %v156
        %v158 = vld [vmem:[%s134 + $0x58] sm:$0xff]
        %159 = vst [vmem:[%s135 + $0x58] sm:$0xff] %v158
        %v160 = vld [vmem:[%s134 + $0x60] sm:$0xff]
        %161 = vst [vmem:[%s135 + $0x60] sm:$0xff] %v160
        %v162 = vld [vmem:[%s134 + $0x68] sm:$0xff]
        %163 = vst [vmem:[%s135 + $0x68] sm:$0xff] %v162
        %v164 = vld [vmem:[%s134 + $0x70] sm:$0xff]
        %165 = vst [vmem:[%s135 + $0x70] sm:$0xff] %v164
        %v166 = vld [vmem:[%s134 + $0x78] sm:$0xff]
        %167 = vst [vmem:[%s135 + $0x78] sm:$0xff] %v166
        %v168 = vld [vmem:[%s134 + $0x80] sm:$0xff]
        %169 = vst [vmem:[%s135 + $0x80] sm:$0xff] %v168
        %v170 = vld [vmem:[%s134 + $0x88] sm:$0xff]
        %171 = vst [vmem:[%s135 + $0x88] sm:$0xff] %v170
        %v172 = vld [vmem:[%s134 + $0x90] sm:$0xff]
        %173 = vst [vmem:[%s135 + $0x90] sm:$0xff] %v172
        %v174 = vld [vmem:[%s134 + $0x98] sm:$0xff]
        %175 = vst [vmem:[%s135 + $0x98] sm:$0xff] %v174
        %v176 = vld [vmem:[%s134 + $0xa0] sm:$0xff]
        %177 = vst [vmem:[%s135 + $0xa0] sm:$0xff] %v176
        %v178 = vld [vmem:[%s134 + $0xa8] sm:$0xff]
        %179 = vst [vmem:[%s135 + $0xa8] sm:$0xff] %v178
        %v180 = vld [vmem:[%s134 + $0xb0] sm:$0xff]
        %181 = vst [vmem:[%s135 + $0xb0] sm:$0xff] %v180
        %v182 = vld [vmem:[%s134 + $0xb8] sm:$0xff]
        %183 = vst [vmem:[%s135 + $0xb8] sm:$0xff] %v182
      $region67: #{upconvblock_forward.1} parent=61 // loop_footer
        %s133 = sadd.s32 1, %s129
      $region68: #{upconvblock_forward.1} parent=61 // loop_footer_branch
        %128 = sbr.rel target = $region64
      $region69: #{upconvblock_forward.1} parent=61 // loop_exit
        _
    $region62: #{upconvblock_forward.1} parent=46 // pred_fallthru
      _
    %p184 = pneg %p124
    // Predicated region
    $region70: #{upconvblock_forward.1} parent=46 // pred_check
      _
    $region71: #{upconvblock_forward.1} parent=46 // pred_check_branch
      %186 = sbr.rel (%p124) target = $region73
    $region72: #{upconvblock_forward.1} parent=46 // pred_region
      %s187 = sand.u32 192, 7
    $region73: #{upconvblock_forward.1} parent=46 // pred_fallthru
      _
  $region47: #{upconvblock_forward.1} parent=0 // pred_fallthru
    _
  // Predicated region
  $region48: #{upconvblock_forward.1} parent=0 // pred_check
    %p109 = pneg %p105
  $region49: #{upconvblock_forward.1} parent=0 // pred_check_branch
    %111 = sbr.rel (%p109) target = $region51
  $region50: #{upconvblock_forward.1} parent=0 // pred_region
    %s112 = sshllo.u32 0, 192
    loop: start=0, step=1, limit=1
    $region52: #{upconvblock_forward.1} parent=50 // loop_pre_header
      _
    $region53: #{upconvblock_forward.1} parent=50 // loop_header
      %s114 = sphi 0, %s118
      %p115 = scmp.ge.s32.totalorder %s114, 1
      %s119 = sphi %s101, %s101
      %s120 = sphi %s102, %s102
    $region54: #{upconvblock_forward.1} parent=50 // loop_header_branch
      %117 = sbr.rel (%p115) target = $region58
    $region55: #{upconvblock_forward.1} parent=50 // loop_body
      %v121 = vld [vmem:[%s119] sm:%s112]
      %122 = vst [vmem:[%s120] sm:%s112] %v121
    $region56: #{upconvblock_forward.1} parent=50 // loop_footer
      %s118 = sadd.s32 1, %s114
    $region57: #{upconvblock_forward.1} parent=50 // loop_footer_branch
      %113 = sbr.rel target = $region53
    $region58: #{upconvblock_forward.1} parent=50 // loop_exit
      _
  $region51: #{upconvblock_forward.1} parent=0 // pred_fallthru
    _
  // Predicated region
  $region74: #{upconvblock_forward.1} parent=0 // pred_check
    _
  $region75: #{upconvblock_forward.1} parent=0 // pred_check_branch
    %190 = sbr.rel (0) target = $region77
  $region76: #{upconvblock_forward.1} parent=0 // pred_region
    %191 = vsyncadd %s103, 3072
  $region77: #{upconvblock_forward.1} parent=0 // pred_fallthru
    _
  %s192 = scalar_lea.vmem %s2, 384
  %s193 = scalar_lea.vmem [#allocation2], 384
  %s194 = scalar_lea.sflag [#allocation3], 2
  %p196 = scmp.lt.u32.totalorder 192, 8
  %p197 = pneg %p196
  // Predicated region
  $region78: #{upconvblock_forward.1} parent=0 // pred_check
    _
  $region79: #{upconvblock_forward.1} parent=0 // pred_check_branch
    %199 = sbr.rel (%p196) target = $region81
  $region80: #{upconvblock_forward.1} parent=0 // pred_region
    %s214 = sand.u32 192, 7
    %p215 = scmp.eq.s32.totalorder %s214, 0
    // Predicated region
    $region93: #{upconvblock_forward.1} parent=80 // pred_check
      %p216 = pneg %p215
    $region94: #{upconvblock_forward.1} parent=80 // pred_check_branch
      %218 = sbr.rel (%p216) target = $region96
    $region95: #{upconvblock_forward.1} parent=80 // pred_region
      loop: start=0, step=1, limit=1
      $region97: #{upconvblock_forward.1} parent=95 // loop_pre_header
        _
      $region98: #{upconvblock_forward.1} parent=95 // loop_header
        %s220 = sphi 0, %s224
        %p221 = scmp.ge.s32.totalorder %s220, 1
        %s225 = sphi %s192, %s192
        %s226 = sphi %s193, %s193
      $region99: #{upconvblock_forward.1} parent=95 // loop_header_branch
        %223 = sbr.rel (%p221) target = $region103
      $region100: #{upconvblock_forward.1} parent=95 // loop_body
        %v227 = vld [vmem:[%s225] sm:$0xff]
        %228 = vst [vmem:[%s226] sm:$0xff] %v227
        %v229 = vld [vmem:[%s225 + $0x8] sm:$0xff]
        %230 = vst [vmem:[%s226 + $0x8] sm:$0xff] %v229
        %v231 = vld [vmem:[%s225 + $0x10] sm:$0xff]
        %232 = vst [vmem:[%s226 + $0x10] sm:$0xff] %v231
        %v233 = vld [vmem:[%s225 + $0x18] sm:$0xff]
        %234 = vst [vmem:[%s226 + $0x18] sm:$0xff] %v233
        %v235 = vld [vmem:[%s225 + $0x20] sm:$0xff]
        %236 = vst [vmem:[%s226 + $0x20] sm:$0xff] %v235
        %v237 = vld [vmem:[%s225 + $0x28] sm:$0xff]
        %238 = vst [vmem:[%s226 + $0x28] sm:$0xff] %v237
        %v239 = vld [vmem:[%s225 + $0x30] sm:$0xff]
        %240 = vst [vmem:[%s226 + $0x30] sm:$0xff] %v239
        %v241 = vld [vmem:[%s225 + $0x38] sm:$0xff]
        %242 = vst [vmem:[%s226 + $0x38] sm:$0xff] %v241
        %v243 = vld [vmem:[%s225 + $0x40] sm:$0xff]
        %244 = vst [vmem:[%s226 + $0x40] sm:$0xff] %v243
        %v245 = vld [vmem:[%s225 + $0x48] sm:$0xff]
        %246 = vst [vmem:[%s226 + $0x48] sm:$0xff] %v245
        %v247 = vld [vmem:[%s225 + $0x50] sm:$0xff]
        %248 = vst [vmem:[%s226 + $0x50] sm:$0xff] %v247
        %v249 = vld [vmem:[%s225 + $0x58] sm:$0xff]
        %250 = vst [vmem:[%s226 + $0x58] sm:$0xff] %v249
        %v251 = vld [vmem:[%s225 + $0x60] sm:$0xff]
        %252 = vst [vmem:[%s226 + $0x60] sm:$0xff] %v251
        %v253 = vld [vmem:[%s225 + $0x68] sm:$0xff]
        %254 = vst [vmem:[%s226 + $0x68] sm:$0xff] %v253
        %v255 = vld [vmem:[%s225 + $0x70] sm:$0xff]
        %256 = vst [vmem:[%s226 + $0x70] sm:$0xff] %v255
        %v257 = vld [vmem:[%s225 + $0x78] sm:$0xff]
        %258 = vst [vmem:[%s226 + $0x78] sm:$0xff] %v257
        %v259 = vld [vmem:[%s225 + $0x80] sm:$0xff]
        %260 = vst [vmem:[%s226 + $0x80] sm:$0xff] %v259
        %v261 = vld [vmem:[%s225 + $0x88] sm:$0xff]
        %262 = vst [vmem:[%s226 + $0x88] sm:$0xff] %v261
        %v263 = vld [vmem:[%s225 + $0x90] sm:$0xff]
        %264 = vst [vmem:[%s226 + $0x90] sm:$0xff] %v263
        %v265 = vld [vmem:[%s225 + $0x98] sm:$0xff]
        %266 = vst [vmem:[%s226 + $0x98] sm:$0xff] %v265
        %v267 = vld [vmem:[%s225 + $0xa0] sm:$0xff]
        %268 = vst [vmem:[%s226 + $0xa0] sm:$0xff] %v267
        %v269 = vld [vmem:[%s225 + $0xa8] sm:$0xff]
        %270 = vst [vmem:[%s226 + $0xa8] sm:$0xff] %v269
        %v271 = vld [vmem:[%s225 + $0xb0] sm:$0xff]
        %272 = vst [vmem:[%s226 + $0xb0] sm:$0xff] %v271
        %v273 = vld [vmem:[%s225 + $0xb8] sm:$0xff]
        %274 = vst [vmem:[%s226 + $0xb8] sm:$0xff] %v273
      $region101: #{upconvblock_forward.1} parent=95 // loop_footer
        %s224 = sadd.s32 1, %s220
      $region102: #{upconvblock_forward.1} parent=95 // loop_footer_branch
        %219 = sbr.rel target = $region98
      $region103: #{upconvblock_forward.1} parent=95 // loop_exit
        _
    $region96: #{upconvblock_forward.1} parent=80 // pred_fallthru
      _
    %p275 = pneg %p215
    // Predicated region
    $region104: #{upconvblock_forward.1} parent=80 // pred_check
      _
    $region105: #{upconvblock_forward.1} parent=80 // pred_check_branch
      %277 = sbr.rel (%p215) target = $region107
    $region106: #{upconvblock_forward.1} parent=80 // pred_region
      %s278 = sand.u32 192, 7
    $region107: #{upconvblock_forward.1} parent=80 // pred_fallthru
      _
  $region81: #{upconvblock_forward.1} parent=0 // pred_fallthru
    _
  // Predicated region
  $region82: #{upconvblock_forward.1} parent=0 // pred_check
    %p200 = pneg %p196
  $region83: #{upconvblock_forward.1} parent=0 // pred_check_branch
    %202 = sbr.rel (%p200) target = $region85
  $region84: #{upconvblock_forward.1} parent=0 // pred_region
    %s203 = sshllo.u32 0, 192
    loop: start=0, step=1, limit=1
    $region86: #{upconvblock_forward.1} parent=84 // loop_pre_header
      _
    $region87: #{upconvblock_forward.1} parent=84 // loop_header
      %s205 = sphi 0, %s209
      %p206 = scmp.ge.s32.totalorder %s205, 1
      %s210 = sphi %s192, %s192
      %s211 = sphi %s193, %s193
    $region88: #{upconvblock_forward.1} parent=84 // loop_header_branch
      %208 = sbr.rel (%p206) target = $region92
    $region89: #{upconvblock_forward.1} parent=84 // loop_body
      %v212 = vld [vmem:[%s210] sm:%s203]
      %213 = vst [vmem:[%s211] sm:%s203] %v212
    $region90: #{upconvblock_forward.1} parent=84 // loop_footer
      %s209 = sadd.s32 1, %s205
    $region91: #{upconvblock_forward.1} parent=84 // loop_footer_branch
      %204 = sbr.rel target = $region87
    $region92: #{upconvblock_forward.1} parent=84 // loop_exit
      _
  $region85: #{upconvblock_forward.1} parent=0 // pred_fallthru
    _
  // Predicated region
  $region108: #{upconvblock_forward.1} parent=0 // pred_check
    _
  $region109: #{upconvblock_forward.1} parent=0 // pred_check_branch
    %281 = sbr.rel (0) target = $region111
  $region110: #{upconvblock_forward.1} parent=0 // pred_region
    %282 = vsyncadd %s194, 3072
  $region111: #{upconvblock_forward.1} parent=0 // pred_fallthru
    _
  %v283 = vld [vmem:[%s0] sm:$0xff]
  %v284 = vld [vmem:[%s0 + $0x8] sm:$0xff]
  %v285 = vld [vmem:[%s0 + $0x10] sm:$0xff]
  %v286 = vld [vmem:[%s0 + $0x18] sm:$0xff]
  %v287 = vlaneseq
  %v288 = vshrl.u32 %v287, 7
  %v289 = vadd.s32 %v288, 8
  %v290 = vadd.s32 %v288, 16
  %v291 = vadd.s32 %v288, 24
  %vm292 = vcmp.lt.s32.totalorder %v288, 0
  %v293 = vsub.s32 0, %v288
  %v294 = vsel %vm292, %v293, %v288
  %v295 = vshrl.u32 %v294, 4
  %v296 = vand.u32 %v294, 15
  %v297 = vsub.s32 0, %v296
  %v298 = vsel %vm292, %v297, %v296
  %vm299 = vcmp.lt.s32.totalorder %v289, 0
  %v300 = vsub.s32 0, %v289
  %v301 = vsel %vm299, %v300, %v289
  %v302 = vshrl.u32 %v301, 4
  %v303 = vand.u32 %v301, 15
  %v304 = vsub.s32 0, %v303
  %v305 = vsel %vm299, %v304, %v303
  %vm306 = vcmp.lt.s32.totalorder %v290, 0
  %v307 = vsub.s32 0, %v290
  %v308 = vsel %vm306, %v307, %v290
  %v309 = vshrl.u32 %v308, 4
  %v310 = vand.u32 %v308, 15
  %v311 = vsub.s32 0, %v310
  %v312 = vsel %vm306, %v311, %v310
  %vm313 = vcmp.lt.s32.totalorder %v291, 0
  %v314 = vsub.s32 0, %v291
  %v315 = vsel %vm313, %v314, %v291
  %v316 = vshrl.u32 %v315, 4
  %v317 = vand.u32 %v315, 15
  %v318 = vsub.s32 0, %v317
  %v319 = vsel %vm313, %v318, %v317
  %vm320 = vcmp.ne.s32.totalorder %v298, 0
  %vm321 = vcmp.ne.s32.totalorder %v305, 0
  %vm322 = vcmp.ne.s32.totalorder %v312, 0
  %vm323 = vcmp.ne.s32.totalorder %v319, 0
  %vm324 = vcmp.lt.s32.totalorder %v298, 0
  %vm325 = vcmp.lt.s32.totalorder %v305, 0
  %vm326 = vcmp.lt.s32.totalorder %v312, 0
  %vm327 = vcmp.lt.s32.totalorder %v319, 0
  %vm328 = vmand %vm324, %vm320
  %vm329 = vmand %vm325, %vm321
  %vm330 = vmand %vm326, %vm322
  %vm331 = vmand %vm327, %vm323
  %v332 = vadd.s32 %v298, 16
  %v333 = vadd.s32 %v305, 16
  %v334 = vadd.s32 %v312, 16
  %v335 = vadd.s32 %v319, 16
  %v336 = vsel %vm328, %v332, %v298
  %v337 = vsel %vm329, %v333, %v305
  %v338 = vsel %vm330, %v334, %v312
  %v339 = vsel %vm331, %v335, %v319
  %vm340 = vcmp.gt.s32.totalorder %v336, 0
  %vm341 = vcmp.gt.s32.totalorder %v337, 0
  %vm342 = vcmp.gt.s32.totalorder %v338, 0
  %vm343 = vcmp.gt.s32.totalorder %v339, 0
  %v344 = vsel %vm340, 1, 0
  %v345 = vsel %vm341, 1, 0
  %v346 = vsel %vm342, 1, 0
  %v347 = vsel %vm343, 1, 0
  %v348 = vcvt.s32.f32 %v344
  %v349 = vcvt.s32.f32 %v345
  %v350 = vcvt.s32.f32 %v346
  %v351 = vcvt.s32.f32 %v347
  %vm352 = vcmp.lt.s32.totalorder %v336, 15
  %vm353 = vcmp.lt.s32.totalorder %v337, 15
  %vm354 = vcmp.lt.s32.totalorder %v338, 15
  %vm355 = vcmp.lt.s32.totalorder %v339, 15
  %v356 = vsel %vm352, 1, 0
  %v357 = vsel %vm353, 1, 0
  %v358 = vsel %vm354, 1, 0
  %v359 = vsel %vm355, 1, 0
  %v360 = vcvt.s32.f32 %v356
  %v361 = vcvt.s32.f32 %v357
  %v362 = vcvt.s32.f32 %v358
  %v363 = vcvt.s32.f32 %v359
  %s364 = smul.u32 4, 3
  %s365 = smul.u32 %s364, 16
  %s366 = smul.u32 %s365, 1
  %s367 = sshll.u32 %s366, 4
  %368 = dma.done [#allocation3], %s367
  %v369 = vrot.slane %v283, 7
  %v370 = vrot.slane %v284, 7
  %v371 = vrot.slane %v285, 7
  %v372 = vrot.slane %v286, 7
  %vm373 = vcmp.lt.s32.totalorder %v288, 1
  %v374 = vsel %vm373, %v371, %v372
  %v375 = vsel %vm373, %v370, %v371
  %v376 = vsel %vm373, %v369, %v370
  %v377 = vsel %vm373, %v372, %v369
  %v378 = vmul.f32 %v377, %v348
  %v379 = vmul.f32 %v376, %v349
  %v380 = vmul.f32 %v375, %v350
  %v381 = vmul.f32 %v374, %v351
  %v382 = vrot.slane %v283, 1
  %v383 = vrot.slane %v284, 1
  %v384 = vrot.slane %v285, 1
  %v385 = vrot.slane %v286, 1
  %vm386 = vcmp.lt.s32.totalorder %v288, 7
  %v387 = vsel %vm386, %v384, %v385
  %v388 = vsel %vm386, %v383, %v384
  %v389 = vsel %vm386, %v382, %v383
  %v390 = vsel %vm386, %v385, %v382
  %v391 = vmul.f32 %v389, %v360
  %v392 = vmul.f32 %v388, %v361
  %v393 = vmul.f32 %v387, %v362
  %v394 = vmul.f32 %v390, %v363
  %v395 = vpack.c.bf16 %v284, %v283
  %v396 = vpack.c.bf16 %v286, %v285
  %s397 = scalar_lea.vmem [#allocation2], 64
  %v398 = vld [vmem:[%s397] sm:$0xff]
  %v399 = vld [vmem:[%s397 + $0x8] sm:$0xff]
  %v400 = vld [vmem:[%s397 + $0x10] sm:$0xff]
  %v401 = vld [vmem:[%s397 + $0x18] sm:$0xff]
  %v402 = vld [vmem:[%s397 + $0x20] sm:$0xff]
  %v403 = vld [vmem:[%s397 + $0x28] sm:$0xff]
  %v404 = vld [vmem:[%s397 + $0x30] sm:$0xff]
  %v405 = vld [vmem:[%s397 + $0x38] sm:$0xff]
  %v406 = vpack.c.bf16 %v379, %v378
  %v407 = vpack.c.bf16 %v381, %v380
  %v408 = vld [vmem:[#allocation2] sm:$0xff]
  %v409 = vld [vmem:[#allocation2 + $0x8] sm:$0xff]
  %v410 = vld [vmem:[#allocation2 + $0x10] sm:$0xff]
  %v411 = vld [vmem:[#allocation2 + $0x18] sm:$0xff]
  %v412 = vld [vmem:[#allocation2 + $0x20] sm:$0xff]
  %v413 = vld [vmem:[#allocation2 + $0x28] sm:$0xff]
  %v414 = vld [vmem:[#allocation2 + $0x30] sm:$0xff]
  %v415 = vld [vmem:[#allocation2 + $0x38] sm:$0xff]
  %416 = vmatprep.subr.bf16.mxu0 0
  %417 = vmatpush1.bf16.msra.mxu0 %v408
  %418 = vmatprep.subr.bf16.mxu0 0
  %419 = vmatpush1.bf16.msra.mxu0 %v409
  %420 = vmatprep.subr.bf16.mxu0 0
  %421 = vmatpush1.bf16.msra.mxu0 %v410
  %422 = vmatprep.subr.bf16.mxu0 0
  %423 = vmatpush1.bf16.msra.mxu0 %v411
  %424 = vmatprep.subr.bf16.mxu0 0
  %425 = vmatpush1.bf16.msra.mxu0 %v412
  %426 = vmatprep.subr.bf16.mxu0 0
  %427 = vmatpush1.bf16.msra.mxu0 %v413
  %428 = vmatprep.subr.bf16.mxu0 0
  %429 = vmatpush1.bf16.msra.mxu0 %v414
  %430 = vmatprep.subr.bf16.mxu0 0
  %431 = vmatpush1.bf16.msra.mxu0 %v415
  %432 = vmatprep.subr.bf16.mxu0 0
  %433 = vmatpush1.bf16.msra.mxu0 0
  %434 = vmatprep.subr.bf16.mxu0 0
  %435 = vmatpush1.bf16.msra.mxu0 0
  %436 = vmatprep.subr.bf16.mxu0 0
  %437 = vmatpush1.bf16.msra.mxu0 0
  %438 = vmatprep.subr.bf16.mxu0 0
  %439 = vmatpush1.bf16.msra.mxu0 0
  %440 = vmatprep.subr.bf16.mxu0 0
  %441 = vmatpush1.bf16.msra.mxu0 0
  %442 = vmatprep.subr.bf16.mxu0 0
  %443 = vmatpush1.bf16.msra.mxu0 0
  %444 = vmatprep.subr.bf16.mxu0 0
  %445 = vmatpush1.bf16.msra.mxu0 0
  %446 = vmatprep.subr.bf16.mxu0 0
  %447 = vmatpush1.bf16.msra.mxu0 0
  %448 = vmatprep.mubr.bf16.mxu0 0
  %449 = vmatmul.mubr.bf16.gmra.mrb[0].mxu0 %v406
  %v450 = vpop.f32.mrb[0].mxu0
  %v451 = vadd.f32 0.0, %v450
  %v452 = vpop.f32.mrb[0].mxu0
  %v453 = vpop.f32.mrb[0].mxu0
  %v454 = vadd.f32 0.0, %v453
  %v455 = vpop.f32.mrb[0].mxu0
  %456 = vmatprep.mubr.bf16.mxu0 0
  %457 = vmatmul.mubr.bf16.gmra.mrb[0].mxu0 %v407
  %v458 = vpop.f32.mrb[0].mxu0
  %v459 = vadd.f32 0.0, %v458
  %v460 = vpop.f32.mrb[0].mxu0
  %v461 = vpop.f32.mrb[0].mxu0
  %v462 = vadd.f32 0.0, %v461
  %v463 = vpop.f32.mrb[0].mxu0
  %464 = vdwg.mxu0
  %465 = vmatprep.subr.bf16.mxu0 0
  %466 = vmatpush1.bf16.msra.mxu0 %v398
  %467 = vmatprep.subr.bf16.mxu0 0
  %468 = vmatpush1.bf16.msra.mxu0 %v399
  %469 = vmatprep.subr.bf16.mxu0 0
  %470 = vmatpush1.bf16.msra.mxu0 %v400
  %471 = vmatprep.subr.bf16.mxu0 0
  %472 = vmatpush1.bf16.msra.mxu0 %v401
  %473 = vmatprep.subr.bf16.mxu0 0
  %474 = vmatpush1.bf16.msra.mxu0 %v402
  %475 = vmatprep.subr.bf16.mxu0 0
  %476 = vmatpush1.bf16.msra.mxu0 %v403
  %477 = vmatprep.subr.bf16.mxu0 0
  %478 = vmatpush1.bf16.msra.mxu0 %v404
  %479 = vmatprep.subr.bf16.mxu0 0
  %480 = vmatpush1.bf16.msra.mxu0 %v405
  %481 = vmatprep.subr.bf16.mxu0 0
  %482 = vmatpush1.bf16.msra.mxu0 0
  %483 = vmatprep.subr.bf16.mxu0 0
  %484 = vmatpush1.bf16.msra.mxu0 0
  %485 = vmatprep.subr.bf16.mxu0 0
  %486 = vmatpush1.bf16.msra.mxu0 0
  %487 = vmatprep.subr.bf16.mxu0 0
  %488 = vmatpush1.bf16.msra.mxu0 0
  %489 = vmatprep.subr.bf16.mxu0 0
  %490 = vmatpush1.bf16.msra.mxu0 0
  %491 = vmatprep.subr.bf16.mxu0 0
  %492 = vmatpush1.bf16.msra.mxu0 0
  %493 = vmatprep.subr.bf16.mxu0 0
  %494 = vmatpush1.bf16.msra.mxu0 0
  %495 = vmatprep.subr.bf16.mxu0 0
  %496 = vmatpush1.bf16.msra.mxu0 0
  %497 = vmatprep.mubr.bf16.mxu0 0
  %498 = vmatmul.mubr.bf16.gmra.mrb[0].mxu0 %v395
  %v499 = vpop.f32.mrb[0].mxu0
  %v500 = vadd.f32 %v451, %v499
  %v501 = vpop.f32.mrb[0].mxu0
  %v502 = vpop.f32.mrb[0].mxu0
  %v503 = vadd.f32 %v454, %v502
  %v504 = vpop.f32.mrb[0].mxu0
  %505 = vmatprep.mubr.bf16.mxu0 0
  %506 = vmatmul.mubr.bf16.gmra.mrb[0].mxu0 %v396
  %v507 = vpop.f32.mrb[0].mxu0
  %v508 = vadd.f32 %v459, %v507
  %v509 = vpop.f32.mrb[0].mxu0
  %v510 = vpop.f32.mrb[0].mxu0
  %v511 = vadd.f32 %v462, %v510
  %v512 = vpop.f32.mrb[0].mxu0
  %513 = vdwg.mxu0
  %v514 = vpack.c.bf16 %v392, %v391
  %v515 = vpack.c.bf16 %v394, %v393
  %s516 = scalar_lea.vmem [#allocation2], 128
  %v517 = vld [vmem:[%s516] sm:$0xff]
  %v518 = vld [vmem:[%s516 + $0x8] sm:$0xff]
  %v519 = vld [vmem:[%s516 + $0x10] sm:$0xff]
  %v520 = vld [vmem:[%s516 + $0x18] sm:$0xff]
  %v521 = vld [vmem:[%s516 + $0x20] sm:$0xff]
  %v522 = vld [vmem:[%s516 + $0x28] sm:$0xff]
  %v523 = vld [vmem:[%s516 + $0x30] sm:$0xff]
  %v524 = vld [vmem:[%s516 + $0x38] sm:$0xff]
  %525 = vmatprep.subr.bf16.mxu0 0
  %526 = vmatpush1.bf16.msra.mxu0 %v517
  %527 = vmatprep.subr.bf16.mxu0 0
  %528 = vmatpush1.bf16.msra.mxu0 %v518
  %529 = vmatprep.subr.bf16.mxu0 0
  %530 = vmatpush1.bf16.msra.mxu0 %v519
  %531 = vmatprep.subr.bf16.mxu0 0
  %532 = vmatpush1.bf16.msra.mxu0 %v520
  %533 = vmatprep.subr.bf16.mxu0 0
  %534 = vmatpush1.bf16.msra.mxu0 %v521
  %535 = vmatprep.subr.bf16.mxu0 0
  %536 = vmatpush1.bf16.msra.mxu0 %v522
  %537 = vmatprep.subr.bf16.mxu0 0
  %538 = vmatpush1.bf16.msra.mxu0 %v523
  %539 = vmatprep.subr.bf16.mxu0 0
  %540 = vmatpush1.bf16.msra.mxu0 %v524
  %541 = vmatprep.subr.bf16.mxu0 0
  %542 = vmatpush1.bf16.msra.mxu0 0
  %543 = vmatprep.subr.bf16.mxu0 0
  %544 = vmatpush1.bf16.msra.mxu0 0
  %545 = vmatprep.subr.bf16.mxu0 0
  %546 = vmatpush1.bf16.msra.mxu0 0
  %547 = vmatprep.subr.bf16.mxu0 0
  %548 = vmatpush1.bf16.msra.mxu0 0
  %549 = vmatprep.subr.bf16.mxu0 0
  %550 = vmatpush1.bf16.msra.mxu0 0
  %551 = vmatprep.subr.bf16.mxu0 0
  %552 = vmatpush1.bf16.msra.mxu0 0
  %553 = vmatprep.subr.bf16.mxu0 0
  %554 = vmatpush1.bf16.msra.mxu0 0
  %555 = vmatprep.subr.bf16.mxu0 0
  %556 = vmatpush1.bf16.msra.mxu0 0
  %557 = vmatprep.mubr.bf16.mxu0 0
  %558 = vmatmul.mubr.bf16.gmra.mrb[0].mxu0 %v514
  %v559 = vpop.f32.mrb[0].mxu0
  %v560 = vadd.f32 0.0, %v559
  %v561 = vpop.f32.mrb[0].mxu0
  %v562 = vpop.f32.mrb[0].mxu0
  %v563 = vadd.f32 0.0, %v562
  %v564 = vpop.f32.mrb[0].mxu0
  %565 = vmatprep.mubr.bf16.mxu0 0
  %566 = vmatmul.mubr.bf16.gmra.mrb[0].mxu0 %v515
  %v567 = vpop.f32.mrb[0].mxu0
  %v568 = vadd.f32 0.0, %v567
  %v569 = vpop.f32.mrb[0].mxu0
  %v570 = vpop.f32.mrb[0].mxu0
  %v571 = vadd.f32 0.0, %v570
  %v572 = vpop.f32.mrb[0].mxu0
  %573 = vdwg.mxu0
  %v574 = vadd.f32 %v500, %v560
  %v575 = vadd.f32 %v503, %v563
  %v576 = vadd.f32 %v508, %v568
  %v577 = vadd.f32 %v511, %v571
  %v578 = vld [vmem:[%s1] sm:$0x1]
  %v579 = vlaneseq
  %v580 = vshrl.u32 %v579, 7
  %v581 = vsub.s32 0, %v580
  %v582 = vrot.slane %v578, %v581
  %v583 = vadd.f32 %v574, %v582
  %v584 = vadd.f32 %v575, %v582
  %v585 = vadd.f32 %v576, %v582
  %v586 = vadd.f32 %v577, %v582
  %s587 = sshll.u32 %s366, 4
  %588 = dma.done %s103, %s587
  %v589 = vrot.slane %v583, 7
  %v590 = vrot.slane %v584, 7
  %v591 = vrot.slane %v585, 7
  %v592 = vrot.slane %v586, 7
  %v593 = vsel %vm373, %v591, %v592
  %v594 = vsel %vm373, %v590, %v591
  %v595 = vsel %vm373, %v589, %v590
  %v596 = vsel %vm373, %v592, %v589
  %v597 = vmul.f32 %v596, %v348
  %v598 = vmul.f32 %v595, %v349
  %v599 = vmul.f32 %v594, %v350
  %v600 = vmul.f32 %v593, %v351
  %v601 = vrot.slane %v583, 1
  %v602 = vrot.slane %v584, 1
  %v603 = vrot.slane %v585, 1
  %v604 = vrot.slane %v586, 1
  %v605 = vsel %vm386, %v603, %v604
  %v606 = vsel %vm386, %v602, %v603
  %v607 = vsel %vm386, %v601, %v602
  %v608 = vsel %vm386, %v604, %v601
  %v609 = vmul.f32 %v607, %v360
  %v610 = vmul.f32 %v606, %v361
  %v611 = vmul.f32 %v605, %v362
  %v612 = vmul.f32 %v608, %v363
  %v613 = vpack.c.bf16 %v584, %v583
  %v614 = vpack.c.bf16 %v586, %v585
  %s615 = scalar_lea.vmem [#allocation2], 256
  %v616 = vld [vmem:[%s615] sm:$0xff]
  %v617 = vld [vmem:[%s615 + $0x8] sm:$0xff]
  %v618 = vld [vmem:[%s615 + $0x10] sm:$0xff]
  %v619 = vld [vmem:[%s615 + $0x18] sm:$0xff]
  %v620 = vld [vmem:[%s615 + $0x20] sm:$0xff]
  %v621 = vld [vmem:[%s615 + $0x28] sm:$0xff]
  %v622 = vld [vmem:[%s615 + $0x30] sm:$0xff]
  %v623 = vld [vmem:[%s615 + $0x38] sm:$0xff]
  %v624 = vpack.c.bf16 %v598, %v597
  %v625 = vpack.c.bf16 %v600, %v599
  %v626 = vld [vmem:[%s102] sm:$0xff]
  %v627 = vld [vmem:[%s102 + $0x8] sm:$0xff]
  %v628 = vld [vmem:[%s102 + $0x10] sm:$0xff]
  %v629 = vld [vmem:[%s102 + $0x18] sm:$0xff]
  %v630 = vld [vmem:[%s102 + $0x20] sm:$0xff]
  %v631 = vld [vmem:[%s102 + $0x28] sm:$0xff]
  %v632 = vld [vmem:[%s102 + $0x30] sm:$0xff]
  %v633 = vld [vmem:[%s102 + $0x38] sm:$0xff]
  %634 = vmatprep.subr.bf16.mxu0 0
  %635 = vmatpush1.bf16.msra.mxu0 %v626
  %636 = vmatprep.subr.bf16.mxu0 0
  %637 = vmatpush1.bf16.msra.mxu0 %v627
  %638 = vmatprep.subr.bf16.mxu0 0
  %639 = vmatpush1.bf16.msra.mxu0 %v628
  %640 = vmatprep.subr.bf16.mxu0 0
  %641 = vmatpush1.bf16.msra.mxu0 %v629
  %642 = vmatprep.subr.bf16.mxu0 0
  %643 = vmatpush1.bf16.msra.mxu0 %v630
  %644 = vmatprep.subr.bf16.mxu0 0
  %645 = vmatpush1.bf16.msra.mxu0 %v631
  %646 = vmatprep.subr.bf16.mxu0 0
  %647 = vmatpush1.bf16.msra.mxu0 %v632
  %648 = vmatprep.subr.bf16.mxu0 0
  %649 = vmatpush1.bf16.msra.mxu0 %v633
  %650 = vmatprep.subr.bf16.mxu0 0
  %651 = vmatpush1.bf16.msra.mxu0 0
  %652 = vmatprep.subr.bf16.mxu0 0
  %653 = vmatpush1.bf16.msra.mxu0 0
  %654 = vmatprep.subr.bf16.mxu0 0
  %655 = vmatpush1.bf16.msra.mxu0 0
  %656 = vmatprep.subr.bf16.mxu0 0
  %657 = vmatpush1.bf16.msra.mxu0 0
  %658 = vmatprep.subr.bf16.mxu0 0
  %659 = vmatpush1.bf16.msra.mxu0 0
  %660 = vmatprep.subr.bf16.mxu0 0
  %661 = vmatpush1.bf16.msra.mxu0 0
  %662 = vmatprep.subr.bf16.mxu0 0
  %663 = vmatpush1.bf16.msra.mxu0 0
  %664 = vmatprep.subr.bf16.mxu0 0
  %665 = vmatpush1.bf16.msra.mxu0 0
  %666 = vmatprep.mubr.bf16.mxu0 0
  %667 = vmatmul.mubr.bf16.gmra.mrb[0].mxu0 %v624
  %v668 = vpop.f32.mrb[0].mxu0
  %v669 = vadd.f32 0.0, %v668
  %v670 = vpop.f32.mrb[0].mxu0
  %v671 = vpop.f32.mrb[0].mxu0
  %v672 = vadd.f32 0.0, %v671
  %v673 = vpop.f32.mrb[0].mxu0
  %674 = vmatprep.mubr.bf16.mxu0 0
  %675 = vmatmul.mubr.bf16.gmra.mrb[0].mxu0 %v625
  %v676 = vpop.f32.mrb[0].mxu0
  %v677 = vadd.f32 0.0, %v676
  %v678 = vpop.f32.mrb[0].mxu0
  %v679 = vpop.f32.mrb[0].mxu0
  %v680 = vadd.f32 0.0, %v679
  %v681 = vpop.f32.mrb[0].mxu0
  %682 = vdwg.mxu0
  %683 = vmatprep.subr.bf16.mxu0 0
  %684 = vmatpush1.bf16.msra.mxu0 %v616
  %685 = vmatprep.subr.bf16.mxu0 0
  %686 = vmatpush1.bf16.msra.mxu0 %v617
  %687 = vmatprep.subr.bf16.mxu0 0
  %688 = vmatpush1.bf16.msra.mxu0 %v618
  %689 = vmatprep.subr.bf16.mxu0 0
  %690 = vmatpush1.bf16.msra.mxu0 %v619
  %691 = vmatprep.subr.bf16.mxu0 0
  %692 = vmatpush1.bf16.msra.mxu0 %v620
  %693 = vmatprep.subr.bf16.mxu0 0
  %694 = vmatpush1.bf16.msra.mxu0 %v621
  %695 = vmatprep.subr.bf16.mxu0 0
  %696 = vmatpush1.bf16.msra.mxu0 %v622
  %697 = vmatprep.subr.bf16.mxu0 0
  %698 = vmatpush1.bf16.msra.mxu0 %v623
  %699 = vmatprep.subr.bf16.mxu0 0
  %700 = vmatpush1.bf16.msra.mxu0 0
  %701 = vmatprep.subr.bf16.mxu0 0
  %702 = vmatpush1.bf16.msra.mxu0 0
  %703 = vmatprep.subr.bf16.mxu0 0
  %704 = vmatpush1.bf16.msra.mxu0 0
  %705 = vmatprep.subr.bf16.mxu0 0
  %706 = vmatpush1.bf16.msra.mxu0 0
  %707 = vmatprep.subr.bf16.mxu0 0
  %708 = vmatpush1.bf16.msra.mxu0 0
  %709 = vmatprep.subr.bf16.mxu0 0
  %710 = vmatpush1.bf16.msra.mxu0 0
  %711 = vmatprep.subr.bf16.mxu0 0
  %712 = vmatpush1.bf16.msra.mxu0 0
  %713 = vmatprep.subr.bf16.mxu0 0
  %714 = vmatpush1.bf16.msra.mxu0 0
  %715 = vmatprep.mubr.bf16.mxu0 0
  %716 = vmatmul.mubr.bf16.gmra.mrb[0].mxu0 %v613
  %v717 = vpop.f32.mrb[0].mxu0
  %v718 = vadd.f32 %v669, %v717
  %v719 = vpop.f32.mrb[0].mxu0
  %v720 = vpop.f32.mrb[0].mxu0
  %v721 = vadd.f32 %v672, %v720
  %v722 = vpop.f32.mrb[0].mxu0
  %723 = vmatprep.mubr.bf16.mxu0 0
  %724 = vmatmul.mubr.bf16.gmra.mrb[0].mxu0 %v614
  %v725 = vpop.f32.mrb[0].mxu0
  %v726 = vadd.f32 %v677, %v725
  %v727 = vpop.f32.mrb[0].mxu0
  %v728 = vpop.f32.mrb[0].mxu0
  %v729 = vadd.f32 %v680, %v728
  %v730 = vpop.f32.mrb[0].mxu0
  %731 = vdwg.mxu0
  %v732 = vpack.c.bf16 %v610, %v609
  %v733 = vpack.c.bf16 %v612, %v611
  %s734 = scalar_lea.vmem [#allocation2], 320
  %v735 = vld [vmem:[%s734] sm:$0xff]
  %v736 = vld [vmem:[%s734 + $0x8] sm:$0xff]
  %v737 = vld [vmem:[%s734 + $0x10] sm:$0xff]
  %v738 = vld [vmem:[%s734 + $0x18] sm:$0xff]
  %v739 = vld [vmem:[%s734 + $0x20] sm:$0xff]
  %v740 = vld [vmem:[%s734 + $0x28] sm:$0xff]
  %v741 = vld [vmem:[%s734 + $0x30] sm:$0xff]
  %v742 = vld [vmem:[%s734 + $0x38] sm:$0xff]
  %743 = vmatprep.subr.bf16.mxu0 0
  %744 = vmatpush1.bf16.msra.mxu0 %v735
  %745 = vmatprep.subr.bf16.mxu0 0
  %746 = vmatpush1.bf16.msra.mxu0 %v736
  %747 = vmatprep.subr.bf16.mxu0 0
  %748 = vmatpush1.bf16.msra.mxu0 %v737
  %749 = vmatprep.subr.bf16.mxu0 0
  %750 = vmatpush1.bf16.msra.mxu0 %v738
  %751 = vmatprep.subr.bf16.mxu0 0
  %752 = vmatpush1.bf16.msra.mxu0 %v739
  %753 = vmatprep.subr.bf16.mxu0 0
  %754 = vmatpush1.bf16.msra.mxu0 %v740
  %755 = vmatprep.subr.bf16.mxu0 0
  %756 = vmatpush1.bf16.msra.mxu0 %v741
  %757 = vmatprep.subr.bf16.mxu0 0
  %758 = vmatpush1.bf16.msra.mxu0 %v742
  %759 = vmatprep.subr.bf16.mxu0 0
  %760 = vmatpush1.bf16.msra.mxu0 0
  %761 = vmatprep.subr.bf16.mxu0 0
  %762 = vmatpush1.bf16.msra.mxu0 0
  %763 = vmatprep.subr.bf16.mxu0 0
  %764 = vmatpush1.bf16.msra.mxu0 0
  %765 = vmatprep.subr.bf16.mxu0 0
  %766 = vmatpush1.bf16.msra.mxu0 0
  %767 = vmatprep.subr.bf16.mxu0 0
  %768 = vmatpush1.bf16.msra.mxu0 0
  %769 = vmatprep.subr.bf16.mxu0 0
  %770 = vmatpush1.bf16.msra.mxu0 0
  %771 = vmatprep.subr.bf16.mxu0 0
  %772 = vmatpush1.bf16.msra.mxu0 0
  %773 = vmatprep.subr.bf16.mxu0 0
  %774 = vmatpush1.bf16.msra.mxu0 0
  %775 = vmatprep.mubr.bf16.mxu0 0
  %776 = vmatmul.mubr.bf16.gmra.mrb[0].mxu0 %v732
  %v777 = vpop.f32.mrb[0].mxu0
  %v778 = vadd.f32 0.0, %v777
  %v779 = vpop.f32.mrb[0].mxu0
  %v780 = vpop.f32.mrb[0].mxu0
  %v781 = vadd.f32 0.0, %v780
  %v782 = vpop.f32.mrb[0].mxu0
  %783 = vmatprep.mubr.bf16.mxu0 0
  %784 = vmatmul.mubr.bf16.gmra.mrb[0].mxu0 %v733
  %v785 = vpop.f32.mrb[0].mxu0
  %v786 = vadd.f32 0.0, %v785
  %v787 = vpop.f32.mrb[0].mxu0
  %v788 = vpop.f32.mrb[0].mxu0
  %v789 = vadd.f32 0.0, %v788
  %v790 = vpop.f32.mrb[0].mxu0
  %791 = vdwg.mxu0
  %v792 = vadd.f32 %v718, %v778
  %v793 = vadd.f32 %v721, %v781
  %v794 = vadd.f32 %v726, %v786
  %v795 = vadd.f32 %v729, %v789
  %v796 = vld [vmem:[%s1 + $0x1] sm:$0x1]
  %v797 = vld [vmem:[%s1 + $0x2] sm:$0x1]
  %v798 = vadd.f32 %v792, %v793
  %v799 = vadd.f32 %v798, %v794
  %v800 = vadd.f32 %v799, %v795
  %v801 = vrot.slane %v800, 4
  %v802 = vadd.f32 %v800, %v801
  %v803 = vrot.slane %v802, 2
  %v804 = vadd.f32 %v802, %v803
  %v805 = vrot.slane %v804, 1
  %v806 = vadd.f32 %v804, %v805
  %807 = vrot.lane.b32.xlu0 %v806, 8
  %v808 = vpop.permute.xlu0 %807
  %v809 = vadd.f32 %v806, %v808
  %810 = vrot.lane.b32.xlu0 %v809, 16
  %v811 = vpop.permute.xlu0 %810
  %v812 = vadd.f32 %v809, %v811
  %813 = vrot.lane.b32.xlu0 %v812, 32
  %v814 = vpop.permute.xlu0 %813
  %v815 = vadd.f32 %v812, %v814
  %816 = vrot.lane.b32.xlu0 %v815, 64
  %v817 = vpop.permute.xlu0 %816
  %v818 = vadd.f32 %v815, %v817
  %v819 = vmul.f32 %v792, %v792
  %v820 = vmul.f32 %v793, %v793
  %v821 = vmul.f32 %v794, %v794
  %v822 = vmul.f32 %v795, %v795
  %v823 = vadd.f32 %v819, %v820
  %v824 = vadd.f32 %v823, %v821
  %v825 = vadd.f32 %v824, %v822
  %v826 = vrot.slane %v825, 4
  %v827 = vadd.f32 %v825, %v826
  %v828 = vrot.slane %v827, 2
  %v829 = vadd.f32 %v827, %v828
  %v830 = vrot.slane %v829, 1
  %v831 = vadd.f32 %v829, %v830
  %832 = vrot.lane.b32.xlu0 %v831, 8
  %v833 = vpop.permute.xlu0 %832
  %v834 = vadd.f32 %v831, %v833
  %835 = vrot.lane.b32.xlu0 %v834, 16
  %v836 = vpop.permute.xlu0 %835
  %v837 = vadd.f32 %v834, %v836
  %838 = vrot.lane.b32.xlu0 %v837, 32
  %v839 = vpop.permute.xlu0 %838
  %v840 = vadd.f32 %v837, %v839
  %841 = vrot.lane.b32.xlu0 %v840, 64
  %v842 = vpop.permute.xlu0 %841
  %v843 = vadd.f32 %v840, %v842
  %v844 = vmul.f32 %v818, 0.001953125
  %v845 = vmul.f32 %v843, 0.001953125
  %v846 = vmul.f32 %v844, %v844
  %v847 = vsub.f32 %v845, %v846
  %v848 = vadd.f32 %v847, 1e-05
  %v849 = vrsqrt.pop %v848
  %v850 = vlaneseq
  %v851 = vshrl.u32 %v850, 7
  %v852 = vsub.s32 0, %v851
  %v853 = vrot.slane %v844, %v852
  %v854 = vsub.f32 %v792, %v853
  %v855 = vsub.f32 %v793, %v853
  %v856 = vsub.f32 %v794, %v853
  %v857 = vsub.f32 %v795, %v853
  %v858 = vmul.f32 %v849, %v796
  %v859 = vlaneseq
  %v860 = vshrl.u32 %v859, 7
  %v861 = vsub.s32 0, %v860
  %v862 = vrot.slane %v858, %v861
  %v863 = vmul.f32 %v854, %v862
  %v864 = vmul.f32 %v855, %v862
  %v865 = vmul.f32 %v856, %v862
  %v866 = vmul.f32 %v857, %v862
  %v867 = vlaneseq
  %v868 = vshrl.u32 %v867, 7
  %v869 = vsub.s32 0, %v868
  %v870 = vrot.slane %v797, %v869
  %v871 = vadd.f32 %v863, %v870
  %v872 = vadd.f32 %v864, %v870
  %v873 = vadd.f32 %v865, %v870
  %v874 = vadd.f32 %v866, %v870
  %v875 = vmax.f32 %v871, 0.0
  %v876 = vmax.f32 %v872, 0.0
  %v877 = vmax.f32 %v873, 0.0
  %v878 = vmax.f32 %v874, 0.0
  %s879 = sshll.u32 %s366, 4
  %880 = dma.done %s194, %s879
  %v881 = vrot.slane %v875, 7
  %v882 = vrot.slane %v876, 7
  %v883 = vrot.slane %v877, 7
  %v884 = vrot.slane %v878, 7
  %v885 = vsel %vm373, %v883, %v884
  %v886 = vsel %vm373, %v882, %v883
  %v887 = vsel %vm373, %v881, %v882
  %v888 = vsel %vm373, %v884, %v881
  %v889 = vmul.f32 %v888, %v348
  %v890 = vmul.f32 %v887, %v349
  %v891 = vmul.f32 %v886, %v350
  %v892 = vmul.f32 %v885, %v351
  %v893 = vrot.slane %v875, 1
  %v894 = vrot.slane %v876, 1
  %v895 = vrot.slane %v877, 1
  %v896 = vrot.slane %v878, 1
  %v897 = vsel %vm386, %v895, %v896
  %v898 = vsel %vm386, %v894, %v895
  %v899 = vsel %vm386, %v893, %v894
  %v900 = vsel %vm386, %v896, %v893
  %v901 = vmul.f32 %v899, %v360
  %v902 = vmul.f32 %v898, %v361
  %v903 = vmul.f32 %v897, %v362
  %v904 = vmul.f32 %v900, %v363
  %v905 = vpack.c.bf16 %v876, %v875
  %v906 = vpack.c.bf16 %v878, %v877
  %s907 = scalar_lea.vmem [#allocation2], 448
  %v908 = vld [vmem:[%s907] sm:$0xff]
  %v909 = vld [vmem:[%s907 + $0x8] sm:$0xff]
  %v910 = vld [vmem:[%s907 + $0x10] sm:$0xff]
  %v911 = vld [vmem:[%s907 + $0x18] sm:$0xff]
  %v912 = vld [vmem:[%s907 + $0x20] sm:$0xff]
  %v913 = vld [vmem:[%s907 + $0x28] sm:$0xff]
  %v914 = vld [vmem:[%s907 + $0x30] sm:$0xff]
  %v915 = vld [vmem:[%s907 + $0x38] sm:$0xff]
  %v916 = vpack.c.bf16 %v890, %v889
  %v917 = vpack.c.bf16 %v892, %v891
  %v918 = vld [vmem:[%s193] sm:$0xff]
  %v919 = vld [vmem:[%s193 + $0x8] sm:$0xff]
  %v920 = vld [vmem:[%s193 + $0x10] sm:$0xff]
  %v921 = vld [vmem:[%s193 + $0x18] sm:$0xff]
  %v922 = vld [vmem:[%s193 + $0x20] sm:$0xff]
  %v923 = vld [vmem:[%s193 + $0x28] sm:$0xff]
  %v924 = vld [vmem:[%s193 + $0x30] sm:$0xff]
  %v925 = vld [vmem:[%s193 + $0x38] sm:$0xff]
  %926 = vmatprep.subr.bf16.mxu0 0
  %927 = vmatpush1.bf16.msra.mxu0 %v918
  %928 = vmatprep.subr.bf16.mxu0 0
  %929 = vmatpush1.bf16.msra.mxu0 %v919
  %930 = vmatprep.subr.bf16.mxu0 0
  %931 = vmatpush1.bf16.msra.mxu0 %v920
  %932 = vmatprep.subr.bf16.mxu0 0
  %933 = vmatpush1.bf16.msra.mxu0 %v921
  %934 = vmatprep.subr.bf16.mxu0 0
  %935 = vmatpush1.bf16.msra.mxu0 %v922
  %936 = vmatprep.subr.bf16.mxu0 0
  %937 = vmatpush1.bf16.msra.mxu0 %v923
  %938 = vmatprep.subr.bf16.mxu0 0
  %939 = vmatpush1.bf16.msra.mxu0 %v924
  %940 = vmatprep.subr.bf16.mxu0 0
  %941 = vmatpush1.bf16.msra.mxu0 %v925
  %942 = vmatprep.subr.bf16.mxu0 0
  %943 = vmatpush1.bf16.msra.mxu0 0
  %944 = vmatprep.subr.bf16.mxu0 0
  %945 = vmatpush1.bf16.msra.mxu0 0
  %946 = vmatprep.subr.bf16.mxu0 0
  %947 = vmatpush1.bf16.msra.mxu0 0
  %948 = vmatprep.subr.bf16.mxu0 0
  %949 = vmatpush1.bf16.msra.mxu0 0
  %950 = vmatprep.subr.bf16.mxu0 0
  %951 = vmatpush1.bf16.msra.mxu0 0
  %952 = vmatprep.subr.bf16.mxu0 0
  %953 = vmatpush1.bf16.msra.mxu0 0
  %954 = vmatprep.subr.bf16.mxu0 0
  %955 = vmatpush1.bf16.msra.mxu0 0
  %956 = vmatprep.subr.bf16.mxu0 0
  %957 = vmatpush1.bf16.msra.mxu0 0
  %958 = vmatprep.mubr.bf16.mxu0 0
  %959 = vmatmul.mubr.bf16.gmra.mrb[0].mxu0 %v916
  %v960 = vpop.f32.mrb[0].mxu0
  %v961 = vadd.f32 0.0, %v960
  %v962 = vpop.f32.mrb[0].mxu0
  %v963 = vpop.f32.mrb[0].mxu0
  %v964 = vadd.f32 0.0, %v963
  %v965 = vpop.f32.mrb[0].mxu0
  %966 = vmatprep.mubr.bf16.mxu0 0
  %967 = vmatmul.mubr.bf16.gmra.mrb[0].mxu0 %v917
  %v968 = vpop.f32.mrb[0].mxu0
  %v969 = vadd.f32 0.0, %v968
  %v970 = vpop.f32.mrb[0].mxu0
  %v971 = vpop.f32.mrb[0].mxu0
  %v972 = vadd.f32 0.0, %v971
  %v973 = vpop.f32.mrb[0].mxu0
  %974 = vdwg.mxu0
  %975 = vmatprep.subr.bf16.mxu0 0
  %976 = vmatpush1.bf16.msra.mxu0 %v908
  %977 = vmatprep.subr.bf16.mxu0 0
  %978 = vmatpush1.bf16.msra.mxu0 %v909
  %979 = vmatprep.subr.bf16.mxu0 0
  %980 = vmatpush1.bf16.msra.mxu0 %v910
  %981 = vmatprep.subr.bf16.mxu0 0
  %982 = vmatpush1.bf16.msra.mxu0 %v911
  %983 = vmatprep.subr.bf16.mxu0 0
  %984 = vmatpush1.bf16.msra.mxu0 %v912
  %985 = vmatprep.subr.bf16.mxu0 0
  %986 = vmatpush1.bf16.msra.mxu0 %v913
  %987 = vmatprep.subr.bf16.mxu0 0
  %988 = vmatpush1.bf16.msra.mxu0 %v914
  %989 = vmatprep.subr.bf16.mxu0 0
  %990 = vmatpush1.bf16.msra.mxu0 %v915
  %991 = vmatprep.subr.bf16.mxu0 0
  %992 = vmatpush1.bf16.msra.mxu0 0
  %993 = vmatprep.subr.bf16.mxu0 0
  %994 = vmatpush1.bf16.msra.mxu0 0
  %995 = vmatprep.subr.bf16.mxu0 0
  %996 = vmatpush1.bf16.msra.mxu0 0
  %997 = vmatprep.subr.bf16.mxu0 0
  %998 = vmatpush1.bf16.msra.mxu0 0
  %999 = vmatprep.subr.bf16.mxu0 0
  %1000 = vmatpush1.bf16.msra.mxu0 0
  %1001 = vmatprep.subr.bf16.mxu0 0
  %1002 = vmatpush1.bf16.msra.mxu0 0
  %1003 = vmatprep.subr.bf16.mxu0 0
  %1004 = vmatpush1.bf16.msra.mxu0 0
  %1005 = vmatprep.subr.bf16.mxu0 0
  %1006 = vmatpush1.bf16.msra.mxu0 0
  %1007 = vmatprep.mubr.bf16.mxu0 0
  %1008 = vmatmul.mubr.bf16.gmra.mrb[0].mxu0 %v905
  %v1009 = vpop.f32.mrb[0].mxu0
  %v1010 = vadd.f32 %v961, %v1009
  %v1011 = vpop.f32.mrb[0].mxu0
  %v1012 = vpop.f32.mrb[0].mxu0
  %v1013 = vadd.f32 %v964, %v1012
  %v1014 = vpop.f32.mrb[0].mxu0
  %1015 = vmatprep.mubr.bf16.mxu0 0
  %1016 = vmatmul.mubr.bf16.gmra.mrb[0].mxu0 %v906
  %v1017 = vpop.f32.mrb[0].mxu0
  %v1018 = vadd.f32 %v969, %v1017
  %v1019 = vpop.f32.mrb[0].mxu0
  %v1020 = vpop.f32.mrb[0].mxu0
  %v1021 = vadd.f32 %v972, %v1020
  %v1022 = vpop.f32.mrb[0].mxu0
  %1023 = vdwg.mxu0
  %v1024 = vpack.c.bf16 %v902, %v901
  %v1025 = vpack.c.bf16 %v904, %v903
  %s1026 = scalar_lea.vmem [#allocation2], 512
  %v1027 = vld [vmem:[%s1026] sm:$0xff]
  %v1028 = vld [vmem:[%s1026 + $0x8] sm:$0xff]
  %v1029 = vld [vmem:[%s1026 + $0x10] sm:$0xff]
  %v1030 = vld [vmem:[%s1026 + $0x18] sm:$0xff]
  %v1031 = vld [vmem:[%s1026 + $0x20] sm:$0xff]
  %v1032 = vld [vmem:[%s1026 + $0x28] sm:$0xff]
  %v1033 = vld [vmem:[%s1026 + $0x30] sm:$0xff]
  %v1034 = vld [vmem:[%s1026 + $0x38] sm:$0xff]
  %1035 = vmatprep.subr.bf16.mxu0 0
  %1036 = vmatpush1.bf16.msra.mxu0 %v1027
  %1037 = vmatprep.subr.bf16.mxu0 0
  %1038 = vmatpush1.bf16.msra.mxu0 %v1028
  %1039 = vmatprep.subr.bf16.mxu0 0
  %1040 = vmatpush1.bf16.msra.mxu0 %v1029
  %1041 = vmatprep.subr.bf16.mxu0 0
  %1042 = vmatpush1.bf16.msra.mxu0 %v1030
  %1043 = vmatprep.subr.bf16.mxu0 0
  %1044 = vmatpush1.bf16.msra.mxu0 %v1031
  %1045 = vmatprep.subr.bf16.mxu0 0
  %1046 = vmatpush1.bf16.msra.mxu0 %v1032
  %1047 = vmatprep.subr.bf16.mxu0 0
  %1048 = vmatpush1.bf16.msra.mxu0 %v1033
  %1049 = vmatprep.subr.bf16.mxu0 0
  %1050 = vmatpush1.bf16.msra.mxu0 %v1034
  %1051 = vmatprep.subr.bf16.mxu0 0
  %1052 = vmatpush1.bf16.msra.mxu0 0
  %1053 = vmatprep.subr.bf16.mxu0 0
  %1054 = vmatpush1.bf16.msra.mxu0 0
  %1055 = vmatprep.subr.bf16.mxu0 0
  %1056 = vmatpush1.bf16.msra.mxu0 0
  %1057 = vmatprep.subr.bf16.mxu0 0
  %1058 = vmatpush1.bf16.msra.mxu0 0
  %1059 = vmatprep.subr.bf16.mxu0 0
  %1060 = vmatpush1.bf16.msra.mxu0 0
  %1061 = vmatprep.subr.bf16.mxu0 0
  %1062 = vmatpush1.bf16.msra.mxu0 0
  %1063 = vmatprep.subr.bf16.mxu0 0
  %1064 = vmatpush1.bf16.msra.mxu0 0
  %1065 = vmatprep.subr.bf16.mxu0 0
  %1066 = vmatpush1.bf16.msra.mxu0 0
  %1067 = vmatprep.mubr.bf16.mxu0 0
  %1068 = vmatmul.mubr.bf16.gmra.mrb[0].mxu0 %v1024
  %v1069 = vpop.f32.mrb[0].mxu0
  %v1070 = vadd.f32 0.0, %v1069
  %v1071 = vpop.f32.mrb[0].mxu0
  %v1072 = vpop.f32.mrb[0].mxu0
  %v1073 = vadd.f32 0.0, %v1072
  %v1074 = vpop.f32.mrb[0].mxu0
  %1075 = vmatprep.mubr.bf16.mxu0 0
  %1076 = vmatmul.mubr.bf16.gmra.mrb[0].mxu0 %v1025
  %v1077 = vpop.f32.mrb[0].mxu0
  %v1078 = vadd.f32 0.0, %v1077
  %v1079 = vpop.f32.mrb[0].mxu0
  %v1080 = vpop.f32.mrb[0].mxu0
  %v1081 = vadd.f32 0.0, %v1080
  %v1082 = vpop.f32.mrb[0].mxu0
  %1083 = vdwg.mxu0
  %v1084 = vadd.f32 %v1010, %v1070
  %v1085 = vadd.f32 %v1013, %v1073
  %v1086 = vadd.f32 %v1018, %v1078
  %v1087 = vadd.f32 %v1021, %v1081
  %v1088 = vld [vmem:[%s1 + $0x3] sm:$0x1]
  %v1089 = vld [vmem:[%s1 + $0x4] sm:$0x1]
  %v1090 = vadd.f32 %v1084, %v1085
  %v1091 = vadd.f32 %v1090, %v1086
  %v1092 = vadd.f32 %v1091, %v1087
  %v1093 = vrot.slane %v1092, 4
  %v1094 = vadd.f32 %v1092, %v1093
  %v1095 = vrot.slane %v1094, 2
  %v1096 = vadd.f32 %v1094, %v1095
  %v1097 = vrot.slane %v1096, 1
  %v1098 = vadd.f32 %v1096, %v1097
  %1099 = vrot.lane.b32.xlu0 %v1098, 8
  %v1100 = vpop.permute.xlu0 %1099
  %v1101 = vadd.f32 %v1098, %v1100
  %1102 = vrot.lane.b32.xlu0 %v1101, 16
  %v1103 = vpop.permute.xlu0 %1102
  %v1104 = vadd.f32 %v1101, %v1103
  %1105 = vrot.lane.b32.xlu0 %v1104, 32
  %v1106 = vpop.permute.xlu0 %1105
  %v1107 = vadd.f32 %v1104, %v1106
  %1108 = vrot.lane.b32.xlu0 %v1107, 64
  %v1109 = vpop.permute.xlu0 %1108
  %v1110 = vadd.f32 %v1107, %v1109
  %v1111 = vmul.f32 %v1084, %v1084
  %v1112 = vmul.f32 %v1085, %v1085
  %v1113 = vmul.f32 %v1086, %v1086
  %v1114 = vmul.f32 %v1087, %v1087
  %v1115 = vadd.f32 %v1111, %v1112
  %v1116 = vadd.f32 %v1115, %v1113
  %v1117 = vadd.f32 %v1116, %v1114
  %v1118 = vrot.slane %v1117, 4
  %v1119 = vadd.f32 %v1117, %v1118
  %v1120 = vrot.slane %v1119, 2
  %v1121 = vadd.f32 %v1119, %v1120
  %v1122 = vrot.slane %v1121, 1
  %v1123 = vadd.f32 %v1121, %v1122
  %1124 = vrot.lane.b32.xlu0 %v1123, 8
  %v1125 = vpop.permute.xlu0 %1124
  %v1126 = vadd.f32 %v1123, %v1125
  %1127 = vrot.lane.b32.xlu0 %v1126, 16
  %v1128 = vpop.permute.xlu0 %1127
  %v1129 = vadd.f32 %v1126, %v1128
  %1130 = vrot.lane.b32.xlu0 %v1129, 32
  %v1131 = vpop.permute.xlu0 %1130
  %v1132 = vadd.f32 %v1129, %v1131
  %1133 = vrot.lane.b32.xlu0 %v1132, 64
  %v1134 = vpop.permute.xlu0 %1133
  %v1135 = vadd.f32 %v1132, %v1134
  %v1136 = vmul.f32 %v1110, 0.001953125
  %v1137 = vmul.f32 %v1135, 0.001953125
  %v1138 = vmul.f32 %v1136, %v1136
  %v1139 = vsub.f32 %v1137, %v1138
  %v1140 = vadd.f32 %v1139, 1e-05
  %v1141 = vrsqrt.pop %v1140
  %v1142 = vlaneseq
  %v1143 = vshrl.u32 %v1142, 7
  %v1144 = vsub.s32 0, %v1143
  %v1145 = vrot.slane %v1136, %v1144
  %v1146 = vsub.f32 %v1084, %v1145
  %v1147 = vsub.f32 %v1085, %v1145
  %v1148 = vsub.f32 %v1086, %v1145
  %v1149 = vsub.f32 %v1087, %v1145
  %v1150 = vmul.f32 %v1141, %v1088
  %v1151 = vlaneseq
  %v1152 = vshrl.u32 %v1151, 7
  %v1153 = vsub.s32 0, %v1152
  %v1154 = vrot.slane %v1150, %v1153
  %v1155 = vmul.f32 %v1146, %v1154
  %v1156 = vmul.f32 %v1147, %v1154
  %v1157 = vmul.f32 %v1148, %v1154
  %v1158 = vmul.f32 %v1149, %v1154
  %v1159 = vlaneseq
  %v1160 = vshrl.u32 %v1159, 7
  %v1161 = vsub.s32 0, %v1160
  %v1162 = vrot.slane %v1089, %v1161
  %v1163 = vadd.f32 %v1155, %v1162
  %v1164 = vadd.f32 %v1156, %v1162
  %v1165 = vadd.f32 %v1157, %v1162
  %v1166 = vadd.f32 %v1158, %v1162
  %v1167 = vmax.f32 %v1163, 0.0
  %v1168 = vmax.f32 %v1164, 0.0
  %v1169 = vmax.f32 %v1165, 0.0
  %v1170 = vmax.f32 %v1166, 0.0
  %1171 = vst [vmem:[%s3] sm:$0xff] %v1167
  %1172 = vst [vmem:[%s3 + $0x8] sm:$0xff] %v1168
  %1173 = vst [vmem:[%s3 + $0x10] sm:$0xff] %v1169
  %1174 = vst [vmem:[%s3 + $0x18] sm:$0xff] %v1170
  // Predicated region
  $region112: #{upconvblock_forward.1} parent=0 // pred_check
    _
  $region113: #{upconvblock_forward.1} parent=0 // pred_check_branch
    %1176 = sbr.rel (0) target = $region115
  $region114: #{upconvblock_forward.1} parent=0 // pred_region
    _
  $region115: #{upconvblock_forward.1} parent=0 // pred_fallthru
    _
  // Predicated region
  $region116: #{upconvblock_forward.1} parent=0 // pred_check
    _
  $region117: #{upconvblock_forward.1} parent=0 // pred_check_branch
    %1178 = sbr.rel (0) target = $region119
  $region118: #{upconvblock_forward.1} parent=0 // pred_region
    _
  $region119: #{upconvblock_forward.1} parent=0 // pred_fallthru
    _
  %1179 = vsyncmov [#allocation3]
  %s1180 = vpop.sfrf %1179
  %p1181 = scmp.eq.s32.totalorder %s1180, 0
  %p1182 = pneg %p1181
  %1184 = shalt.err (%p1182)
  %s1185 = scalar_lea.sflag [#allocation3], 1
  %1186 = vsyncmov %s1185
  %s1187 = vpop.sfrf %1186
  %p1188 = scmp.eq.s32.totalorder %s1187, 0
  %p1189 = pneg %p1188
  %1191 = shalt.err (%p1189)
  %s1192 = scalar_lea.sflag [#allocation3], 2
  %1193 = vsyncmov %s1192
  %s1194 = vpop.sfrf %1193
  %p1195 = scmp.eq.s32.totalorder %s1194, 0
  %p1196 = pneg %p1195
  %1198 = shalt.err (%p1196)

</llo_original>
